<compile_context>
chip_gen: v5e
topology: v5e:2x2
jax: 0.10.0
libtpu: 0.0.40
codegen_flags: <defaults>
</compile_context>

<pallas_src>
import functools

import jax
import jax.numpy as jnp
from jax.experimental import pallas as pl
from jax.experimental.pallas import tpu as pltpu

# Logical (PyTorch) dims.
D_IN, H1, H2, D_OUT = 64, 150, 100, 4
# Lane-padded dims used inside the kernel (multiples of 128 lanes).
H1_P, H2_P, D_OUT_P = 256, 128, 128


def mlp_kernel(x_ref, w1_ref, b1_ref, w2_ref, b2_ref, w3_ref, b3_ref, o_ref):
    # Layer 1: (TB,64)bf16 @ (64,256)bf16 -> f32 acc, bias+ReLU in f32.
    h1 = jnp.dot(x_ref[...], w1_ref[...], preferred_element_type=jnp.float32)
    h1 = jnp.maximum(h1 + b1_ref[...], 0.0)
    # Layer 2: (TB,256)bf16 @ (256,128)bf16 -> f32 acc, bias+ReLU in f32.
    h2 = jnp.dot(h1.astype(jnp.bfloat16), w2_ref[...],
                 preferred_element_type=jnp.float32)
    h2 = jnp.maximum(h2 + b2_ref[...], 0.0)
    # Layer 3: (TB,128)bf16 @ (128,128)bf16 -> f32 acc, bias add in f32.
    out = jnp.dot(h2.astype(jnp.bfloat16), w3_ref[...],
                  preferred_element_type=jnp.float32)
    o_ref[...] = (out + b3_ref[...]).astype(o_ref.dtype)


def _pad2(a, rows, cols):
    return jnp.pad(a, ((0, rows - a.shape[0]), (0, cols - a.shape[1])))


@functools.partial(jax.jit, static_argnames=("block_b",))
def mlp_forward(x, w1, b1, w2, b2, w3, b3, *, block_b=512):
    B = x.shape[0]

    # Batch tile: sublane-aligned, capped by the requested block size.
    tb = min(block_b, B)
    tb = max(8, ((tb + 7) // 8) * 8)
    b_pad = ((B + tb - 1) // tb) * tb
    grid = (pl.cdiv(b_pad, tb),)

    # bf16 activations; bf16 lane-padded weights; f32 biases (VPU math in f32).
    x_p = jnp.pad(x, ((0, b_pad - B), (0, 0))).astype(jnp.bfloat16)
    w1p = _pad2(w1, D_IN, H1_P).astype(jnp.bfloat16)
    b1p = _pad2(b1, 1, H1_P).astype(jnp.float32)
    w2p = _pad2(w2, H1_P, H2_P).astype(jnp.bfloat16)
    b2p = _pad2(b2, 1, H2_P).astype(jnp.float32)
    w3p = _pad2(w3, H2_P, D_OUT_P).astype(jnp.bfloat16)
    b3p = _pad2(b3, 1, D_OUT_P).astype(jnp.float32)

    # Weights/biases: full-array blocks, same block index every grid step
    # -> DMA'd once, VMEM-resident. x/out: tiled over the batch.
    resident = lambda a: pl.BlockSpec(a.shape, lambda i: (0, 0))
    in_specs = [
        pl.BlockSpec((tb, D_IN), lambda i: (i, 0)),
        resident(w1p), resident(b1p),
        resident(w2p), resident(b2p),
        resident(w3p), resident(b3p),
    ]
    out_specs = pl.BlockSpec((tb, D_OUT_P), lambda i: (i, 0))

    flops = 2 * b_pad * (D_IN * H1 + H1 * H2 + H2 * D_OUT)
    bytes_accessed = (
        x_p.size * 2
        + (w1p.size + w2p.size + w3p.size) * 2
        + (b1p.size + b2p.size + b3p.size) * 4
        + b_pad * D_OUT_P * 4
    )

    out_padded = pl.pallas_call(
        mlp_kernel,
        out_shape=jax.ShapeDtypeStruct((b_pad, D_OUT_P), jnp.float32),
        grid=grid,
        in_specs=in_specs,
        out_specs=out_specs,
        compiler_params=pltpu.CompilerParams(
            dimension_semantics=("parallel",)),
        cost_estimate=pl.CostEstimate(
            flops=flops, transcendentals=0, bytes_accessed=bytes_accessed),
    )(x_p, w1p, b1p, w2p, b2p, w3p, b3p)

    # Slice off batch padding and the lane padding of the 4-wide output.
    return out_padded[:B, :D_OUT]


def init_linear(key, in_features, out_features):
    # PyTorch nn.Linear default init: U(-1/sqrt(in), 1/sqrt(in)) for W and b.
    kw, kb = jax.random.split(key)
    bound = 1.0 / (in_features ** 0.5)
    # stored as (in, out) so the kernel computes x @ W
    w = jax.random.uniform(kw, (in_features, out_features), jnp.float32,
                           minval=-bound, maxval=bound)
    b = jax.random.uniform(kb, (1, out_features), jnp.float32,
                           minval=-bound, maxval=bound)
    return w, b


if __name__ == "__main__":
    key = jax.random.PRNGKey(0)
    k_x, k1, k2, k3 = jax.random.split(key, 4)

    # Large enough batch to exercise the batch grid (2 tiles of 512) and keep
    # the MXU row-utilization reasonable; still a tiny problem overall.
    B = 1024
    x = jax.random.normal(k_x, (B, D_IN), jnp.float32)

    w1, b1 = init_linear(k1, D_IN, H1)
    w2, b2 = init_linear(k2, H1, H2)
    w3, b3 = init_linear(k3, H2, D_OUT)

    out = mlp_forward(x, w1, b1, w2, b2, w3, b3, block_b=512)
    out = jax.block_until_ready(out)

    # Reference check in plain f32 JAX (same math as the PyTorch module).
    # Tolerance loosened because the kernel feeds bf16 operands to the MXU
    # (f32 accumulation).
    ref = jnp.maximum(x @ w1 + b1, 0.0)
    ref = jnp.maximum(ref @ w2 + b2, 0.0)
    ref = ref @ w3 + b3

    assert out.shape == (B, D_OUT)
    assert bool(jnp.all(jnp.isfinite(out)))
    assert jnp.allclose(out, ref, atol=2e-2, rtol=2e-2)

    print("KERNEL_OK")
</pallas_src>

<mosaic_0001>
module attributes {stable_mosaic.version = 11 : i64} {
  func.func @mlp_kernel(%arg0: i32, %arg1: memref<512x64xbf16, #tpu.memory_space<vmem>>, %arg2: memref<64x256xbf16, #tpu.memory_space<vmem>>, %arg3: memref<1x256xf32, #tpu.memory_space<vmem>>, %arg4: memref<256x128xbf16, #tpu.memory_space<vmem>>, %arg5: memref<1x128xf32, #tpu.memory_space<vmem>>, %arg6: memref<128x128xbf16, #tpu.memory_space<vmem>>, %arg7: memref<1x128xf32, #tpu.memory_space<vmem>>, %arg8: memref<512x128xf32, #tpu.memory_space<vmem>>) attributes {dimension_semantics = [#tpu.dimension_semantics<parallel>], iteration_bounds = array<i64: 2>, scalar_prefetch = 0 : i64, scratch_operands = 0 : i64, tpu.core_type = #tpu.core_type<tc>, window_params = [{transform_indices = @transform_0, window_bounds = array<i64: 512, 64>}, {pipeline_mode = #tpu.pipeline_mode<synchronous>, transform_indices = @transform_1, window_bounds = array<i64: 64, 256>}, {pipeline_mode = #tpu.pipeline_mode<synchronous>, transform_indices = @transform_2, window_bounds = array<i64: 1, 256>}, {pipeline_mode = #tpu.pipeline_mode<synchronous>, transform_indices = @transform_3, window_bounds = array<i64: 256, 128>}, {pipeline_mode = #tpu.pipeline_mode<synchronous>, transform_indices = @transform_4, window_bounds = array<i64: 1, 128>}, {pipeline_mode = #tpu.pipeline_mode<synchronous>, transform_indices = @transform_5, window_bounds = array<i64: 128, 128>}, {pipeline_mode = #tpu.pipeline_mode<synchronous>, transform_indices = @transform_6, window_bounds = array<i64: 1, 128>}, {transform_indices = @transform_7, window_bounds = array<i64: 512, 128>}]} {
    %c0 = arith.constant 0 : index
    %c0_0 = arith.constant 0 : index
    %0 = vector.load %arg1[%c0, %c0_0] : memref<512x64xbf16, #tpu.memory_space<vmem>>, vector<512x64xbf16>
    %c0_1 = arith.constant 0 : index
    %c0_2 = arith.constant 0 : index
    %1 = vector.load %arg2[%c0_1, %c0_2] : memref<64x256xbf16, #tpu.memory_space<vmem>>, vector<64x256xbf16>
    %cst = arith.constant dense<0.000000e+00> : vector<512x256xf32>
    %2 = tpu.matmul %0, %1, %cst {dimension_numbers = #tpu.dot_dimension_numbers<[1], [0], [0], [1], [0, 0, 1, 1], [], []>} : vector<512x64xbf16>, vector<64x256xbf16>, vector<512x256xf32> -> vector<512x256xf32>
    %c0_3 = arith.constant 0 : index
    %c0_4 = arith.constant 0 : index
    %3 = vector.load %arg3[%c0_3, %c0_4] : memref<1x256xf32, #tpu.memory_space<vmem>>, vector<1x256xf32>
    %4 = vector.broadcast %3 : vector<1x256xf32> to vector<512x256xf32>
    %5 = arith.addf %2, %4 : vector<512x256xf32>
    %cst_5 = arith.constant 0.000000e+00 : f32
    %6 = vector.broadcast %cst_5 : f32 to vector<512x256xf32>
    %7 = arith.maximumf %5, %6 : vector<512x256xf32>
    %8 = arith.truncf %7 : vector<512x256xf32> to vector<512x256xbf16>
    %c0_6 = arith.constant 0 : index
    %c0_7 = arith.constant 0 : index
    %9 = vector.load %arg4[%c0_6, %c0_7] : memref<256x128xbf16, #tpu.memory_space<vmem>>, vector<256x128xbf16>
    %cst_8 = arith.constant dense<0.000000e+00> : vector<512x128xf32>
    %10 = tpu.matmul %8, %9, %cst_8 {dimension_numbers = #tpu.dot_dimension_numbers<[1], [0], [0], [1], [0, 0, 1, 1], [], []>} : vector<512x256xbf16>, vector<256x128xbf16>, vector<512x128xf32> -> vector<512x128xf32>
    %c0_9 = arith.constant 0 : index
    %c0_10 = arith.constant 0 : index
    %11 = vector.load %arg5[%c0_9, %c0_10] : memref<1x128xf32, #tpu.memory_space<vmem>>, vector<1x128xf32>
    %12 = vector.broadcast %11 : vector<1x128xf32> to vector<512x128xf32>
    %13 = arith.addf %10, %12 : vector<512x128xf32>
    %cst_11 = arith.constant 0.000000e+00 : f32
    %14 = vector.broadcast %cst_11 : f32 to vector<512x128xf32>
    %15 = arith.maximumf %13, %14 : vector<512x128xf32>
    %16 = arith.truncf %15 : vector<512x128xf32> to vector<512x128xbf16>
    %c0_12 = arith.constant 0 : index
    %c0_13 = arith.constant 0 : index
    %17 = vector.load %arg6[%c0_12, %c0_13] : memref<128x128xbf16, #tpu.memory_space<vmem>>, vector<128x128xbf16>
    %cst_14 = arith.constant dense<0.000000e+00> : vector<512x128xf32>
    %18 = tpu.matmul %16, %17, %cst_14 {dimension_numbers = #tpu.dot_dimension_numbers<[1], [0], [0], [1], [0, 0, 1, 1], [], []>} : vector<512x128xbf16>, vector<128x128xbf16>, vector<512x128xf32> -> vector<512x128xf32>
    %c0_15 = arith.constant 0 : index
    %c0_16 = arith.constant 0 : index
    %19 = vector.load %arg7[%c0_15, %c0_16] : memref<1x128xf32, #tpu.memory_space<vmem>>, vector<1x128xf32>
    %20 = vector.broadcast %19 : vector<1x128xf32> to vector<512x128xf32>
    %21 = arith.addf %18, %20 : vector<512x128xf32>
    %c0_17 = arith.constant 0 : index
    %c0_18 = arith.constant 0 : index
    %22 = vector.load %arg8[%c0_17, %c0_18] : memref<512x128xf32, #tpu.memory_space<vmem>>, vector<512x128xf32>
    tpu.vector_store %arg8[%c0_17, %c0_18], %21 {strides = array<i32>} : memref<512x128xf32, #tpu.memory_space<vmem>>, vector<512x128xf32>,
    return
  }
  func.func @transform_0(%arg0: i32) -> (i32, i32) {
    %c0_i32 = arith.constant 0 : i32
    %c0_i32_0 = arith.constant 0 : i32
    return %arg0, %c0_i32 : i32, i32
  }
  func.func @transform_1(%arg0: i32) -> (i32, i32) {
    %c0_i32 = arith.constant 0 : i32
    %c0_i32_0 = arith.constant 0 : i32
    %c0_i32_1 = arith.constant 0 : i32
    return %c0_i32, %c0_i32_0 : i32, i32
  }
  func.func @transform_2(%arg0: i32) -> (i32, i32) {
    %c0_i32 = arith.constant 0 : i32
    %c0_i32_0 = arith.constant 0 : i32
    %c0_i32_1 = arith.constant 0 : i32
    return %c0_i32, %c0_i32_0 : i32, i32
  }
  func.func @transform_3(%arg0: i32) -> (i32, i32) {
    %c0_i32 = arith.constant 0 : i32
    %c0_i32_0 = arith.constant 0 : i32
    %c0_i32_1 = arith.constant 0 : i32
    return %c0_i32, %c0_i32_0 : i32, i32
  }
  func.func @transform_4(%arg0: i32) -> (i32, i32) {
    %c0_i32 = arith.constant 0 : i32
    %c0_i32_0 = arith.constant 0 : i32
    %c0_i32_1 = arith.constant 0 : i32
    return %c0_i32, %c0_i32_0 : i32, i32
  }
  func.func @transform_5(%arg0: i32) -> (i32, i32) {
    %c0_i32 = arith.constant 0 : i32
    %c0_i32_0 = arith.constant 0 : i32
    %c0_i32_1 = arith.constant 0 : i32
    return %c0_i32, %c0_i32_0 : i32, i32
  }
  func.func @transform_6(%arg0: i32) -> (i32, i32) {
    %c0_i32 = arith.constant 0 : i32
    %c0_i32_0 = arith.constant 0 : i32
    %c0_i32_1 = arith.constant 0 : i32
    return %c0_i32, %c0_i32_0 : i32, i32
  }
  func.func @transform_7(%arg0: i32) -> (i32, i32) {
    %c0_i32 = arith.constant 0 : i32
    %c0_i32_0 = arith.constant 0 : i32
    return %arg0, %c0_i32 : i32, i32
  }
}

</mosaic_0001>

<llo_original>
// kernel: mlp_forward.1
$region0: #{mlp_forward.1}
  #allocation0 [shape = 'u32[]', space=smem, size = 0x4, offset = 0x4, fixed_abs, tag = 'smem constant byte address 0x4 - core index']
  #allocation1 [shape = 'u32[72,128]{1,0:T(1,128)}', space=vmem, size = 0x9000, scoped, tag = 'internal scratch']
  %s0 = inlined_call_operand.vmem [shape: bf16[1024,64], index: 0, kind: input, shape index: {}]
  %s1 = inlined_call_operand.vmem [shape: bf16[64,256], index: 1, kind: input, shape index: {}]
  %s2 = inlined_call_operand.vmem [shape: f32[1,256], index: 2, kind: input, shape index: {}]
  %s3 = inlined_call_operand.vmem [shape: bf16[256,128], index: 3, kind: input, shape index: {}]
  %s4 = inlined_call_operand.vmem [shape: f32[1,128], index: 4, kind: input, shape index: {}]
  %s5 = inlined_call_operand.vmem [shape: bf16[128,128], index: 5, kind: input, shape index: {}]
  %s6 = inlined_call_operand.vmem [shape: f32[1,128], index: 6, kind: input, shape index: {}]
  %s7 = inlined_call_operand.vmem [shape: f32[1024,128], index: 7, kind: output, shape index: {}]
  %s8 = sld [smem:[#allocation0]]
  $region61: #{mlp_forward.1} parent=0
    _
  %s10 = ssub.s32 1, %s8
  %s11 = scalar_select 0, %s10, %s8
  loop: start=0, step=1, limit=4
  $region2: #{mlp_forward.1} parent=0 // loop_pre_header
    _
  $region3: #{mlp_forward.1} parent=0 // loop_header
    %s13 = sphi 0, %s17
    %p14 = scmp.ge.s32.totalorder %s13, 4
    %s23 = sphi 0, %s25
    %s26 = sphi 0, %s23
    %s27 = sphi 0, %s26
    %s43 = sphi 0, %s27
    %s47 = sphi 0, %s47
    %s49 = sphi 0, %s47
    %s50 = sphi 0, %s49
    %s64 = sphi 0, %s50
    %s68 = sphi 0, %s68
    %s70 = sphi 0, %s68
    %s71 = sphi 0, %s70
    %s85 = sphi 0, %s71
    %s89 = sphi 0, %s89
    %s91 = sphi 0, %s89
    %s92 = sphi 0, %s91
    %s106 = sphi 0, %s92
    %s110 = sphi 0, %s110
    %s112 = sphi 0, %s110
    %s113 = sphi 0, %s112
    %s127 = sphi 0, %s113
    %s131 = sphi 0, %s131
    %s133 = sphi 0, %s131
    %s134 = sphi 0, %s133
    %s148 = sphi 0, %s134
    %s152 = sphi 0, %s152
    %s154 = sphi 0, %s152
    %s155 = sphi 0, %s154
    %s169 = sphi 0, %s155
    %s175 = sphi 0, %s177
    %s178 = sphi 0, %s175
    %s179 = sphi 0, %s178
    %s195 = sphi 0, %s179
  $region4: #{mlp_forward.1} parent=0 // loop_header_branch
    %16 = sbr.rel (%p14) target = $region8
  $region5: #{mlp_forward.1} parent=0 // loop_body
    %s18 = ssub.s32 %s13, 1
    %s19 = ssub.s32 %s13, 2
    %s20 = sadd.s32 %s13, 1
    %s21 = ssub.s32 %s13, %s20
    %p22 = scmp.eq.s32.totalorder %s21, 0
    %s24 = sadd.s32 %s23, 1
    %s25 = scalar_select %p22, %s23, %s24
    %p28 = pneg %p22
    %p29 = scmp.eq.s32.totalorder %s13, 1
    %p30 = por %p28, %p29
    %p31 = scmp.ne.s32.totalorder %s23, %s26
    %p32 = scmp.eq.s32.totalorder %s13, 0
    %p33 = por %p31, %p32
    %p34 = scmp.ne.s32.totalorder %s23, %s26
    %p35 = scmp.eq.s32.totalorder %s18, 1
    %p36 = por %p34, %p35
    %p37 = scmp.ne.s32.totalorder %s26, %s27
    %p38 = scmp.eq.s32.totalorder %s18, 0
    %p39 = por %p37, %p38
    %p40 = scmp.ne.s32.totalorder %s26, %s27
    %p41 = scmp.eq.s32.totalorder %s19, 1
    %p42 = por %p40, %p41
    %p44 = scmp.ne.s32.totalorder %s27, %s43
    %p45 = scmp.eq.s32.totalorder %s19, 0
    %p46 = por %p44, %p45
    %s48 = sadd.s32 %s47, 1
    %p51 = scmp.eq.s32.totalorder %s13, 1
    %p52 = scmp.ne.s32.totalorder %s47, %s49
    %p53 = scmp.eq.s32.totalorder %s13, 0
    %p54 = por %p52, %p53
    %p55 = scmp.ne.s32.totalorder %s47, %s49
    %p56 = scmp.eq.s32.totalorder %s18, 1
    %p57 = por %p55, %p56
    %p58 = scmp.ne.s32.totalorder %s49, %s50
    %p59 = scmp.eq.s32.totalorder %s18, 0
    %p60 = por %p58, %p59
    %p61 = scmp.ne.s32.totalorder %s49, %s50
    %p62 = scmp.eq.s32.totalorder %s19, 1
    %p63 = por %p61, %p62
    %p65 = scmp.ne.s32.totalorder %s50, %s64
    %p66 = scmp.eq.s32.totalorder %s19, 0
    %p67 = por %p65, %p66
    %s69 = sadd.s32 %s68, 1
    %p72 = scmp.eq.s32.totalorder %s13, 1
    %p73 = scmp.ne.s32.totalorder %s68, %s70
    %p74 = scmp.eq.s32.totalorder %s13, 0
    %p75 = por %p73, %p74
    %p76 = scmp.ne.s32.totalorder %s68, %s70
    %p77 = scmp.eq.s32.totalorder %s18, 1
    %p78 = por %p76, %p77
    %p79 = scmp.ne.s32.totalorder %s70, %s71
    %p80 = scmp.eq.s32.totalorder %s18, 0
    %p81 = por %p79, %p80
    %p82 = scmp.ne.s32.totalorder %s70, %s71
    %p83 = scmp.eq.s32.totalorder %s19, 1
    %p84 = por %p82, %p83
    %p86 = scmp.ne.s32.totalorder %s71, %s85
    %p87 = scmp.eq.s32.totalorder %s19, 0
    %p88 = por %p86, %p87
    %s90 = sadd.s32 %s89, 1
    %p93 = scmp.eq.s32.totalorder %s13, 1
    %p94 = scmp.ne.s32.totalorder %s89, %s91
    %p95 = scmp.eq.s32.totalorder %s13, 0
    %p96 = por %p94, %p95
    %p97 = scmp.ne.s32.totalorder %s89, %s91
    %p98 = scmp.eq.s32.totalorder %s18, 1
    %p99 = por %p97, %p98
    %p100 = scmp.ne.s32.totalorder %s91, %s92
    %p101 = scmp.eq.s32.totalorder %s18, 0
    %p102 = por %p100, %p101
    %p103 = scmp.ne.s32.totalorder %s91, %s92
    %p104 = scmp.eq.s32.totalorder %s19, 1
    %p105 = por %p103, %p104
    %p107 = scmp.ne.s32.totalorder %s92, %s106
    %p108 = scmp.eq.s32.totalorder %s19, 0
    %p109 = por %p107, %p108
    %s111 = sadd.s32 %s110, 1
    %p114 = scmp.eq.s32.totalorder %s13, 1
    %p115 = scmp.ne.s32.totalorder %s110, %s112
    %p116 = scmp.eq.s32.totalorder %s13, 0
    %p117 = por %p115, %p116
    %p118 = scmp.ne.s32.totalorder %s110, %s112
    %p119 = scmp.eq.s32.totalorder %s18, 1
    %p120 = por %p118, %p119
    %p121 = scmp.ne.s32.totalorder %s112, %s113
    %p122 = scmp.eq.s32.totalorder %s18, 0
    %p123 = por %p121, %p122
    %p124 = scmp.ne.s32.totalorder %s112, %s113
    %p125 = scmp.eq.s32.totalorder %s19, 1
    %p126 = por %p124, %p125
    %p128 = scmp.ne.s32.totalorder %s113, %s127
    %p129 = scmp.eq.s32.totalorder %s19, 0
    %p130 = por %p128, %p129
    %s132 = sadd.s32 %s131, 1
    %p135 = scmp.eq.s32.totalorder %s13, 1
    %p136 = scmp.ne.s32.totalorder %s131, %s133
    %p137 = scmp.eq.s32.totalorder %s13, 0
    %p138 = por %p136, %p137
    %p139 = scmp.ne.s32.totalorder %s131, %s133
    %p140 = scmp.eq.s32.totalorder %s18, 1
    %p141 = por %p139, %p140
    %p142 = scmp.ne.s32.totalorder %s133, %s134
    %p143 = scmp.eq.s32.totalorder %s18, 0
    %p144 = por %p142, %p143
    %p145 = scmp.ne.s32.totalorder %s133, %s134
    %p146 = scmp.eq.s32.totalorder %s19, 1
    %p147 = por %p145, %p146
    %p149 = scmp.ne.s32.totalorder %s134, %s148
    %p150 = scmp.eq.s32.totalorder %s19, 0
    %p151 = por %p149, %p150
    %s153 = sadd.s32 %s152, 1
    %p156 = scmp.eq.s32.totalorder %s13, 1
    %p157 = scmp.ne.s32.totalorder %s152, %s154
    %p158 = scmp.eq.s32.totalorder %s13, 0
    %p159 = por %p157, %p158
    %p160 = scmp.ne.s32.totalorder %s152, %s154
    %p161 = scmp.eq.s32.totalorder %s18, 1
    %p162 = por %p160, %p161
    %p163 = scmp.ne.s32.totalorder %s154, %s155
    %p164 = scmp.eq.s32.totalorder %s18, 0
    %p165 = por %p163, %p164
    %p166 = scmp.ne.s32.totalorder %s154, %s155
    %p167 = scmp.eq.s32.totalorder %s19, 1
    %p168 = por %p166, %p167
    %p170 = scmp.ne.s32.totalorder %s155, %s169
    %p171 = scmp.eq.s32.totalorder %s19, 0
    %p172 = por %p170, %p171
    %s173 = ssub.s32 %s13, %s20
    %p174 = scmp.eq.s32.totalorder %s173, 0
    %s176 = sadd.s32 %s175, 1
    %s177 = scalar_select %p174, %s175, %s176
    %p180 = pneg %p174
    %p181 = scmp.eq.s32.totalorder %s13, 1
    %p182 = por %p180, %p181
    %p183 = scmp.ne.s32.totalorder %s175, %s178
    %p184 = scmp.eq.s32.totalorder %s13, 0
    %p185 = por %p183, %p184
    %p186 = scmp.ne.s32.totalorder %s175, %s178
    %p187 = scmp.eq.s32.totalorder %s18, 1
    %p188 = por %p186, %p187
    %p189 = scmp.ne.s32.totalorder %s178, %s179
    %p190 = scmp.eq.s32.totalorder %s18, 0
    %p191 = por %p189, %p190
    %p192 = scmp.ne.s32.totalorder %s178, %s179
    %p193 = scmp.eq.s32.totalorder %s19, 1
    %p194 = por %p192, %p193
    %p196 = scmp.ne.s32.totalorder %s179, %s195
    %p197 = scmp.eq.s32.totalorder %s19, 0
    %p198 = por %p196, %p197
    %p199 = scmp.le.s32.totalorder 1, %s13
    %p200 = scmp.lt.s32.totalorder %s13, 3
    %p201 = pnand %p199, %p200
    %p202 = pneg %p201
    // Predicated region
    $region9: #{mlp_forward.1} parent=5 // pred_check
      _
    $region10: #{mlp_forward.1} parent=5 // pred_check_branch
      %204 = sbr.rel (%p201) target = $region12
    $region11: #{mlp_forward.1} parent=5 // pred_region
      %s205 = ssub.s32 %s13, 1
      // Predicated region
      $region13: #{mlp_forward.1} parent=11 // pred_check
        %p206 = pneg %p60
      $region14: #{mlp_forward.1} parent=11 // pred_check_branch
        %208 = sbr.rel (%p206) target = $region16
      $region15: #{mlp_forward.1} parent=11 // pred_region
        _
      $region16: #{mlp_forward.1} parent=11 // pred_fallthru
        _
      // Predicated region
      $region17: #{mlp_forward.1} parent=11 // pred_check
        %p209 = pneg %p81
      $region18: #{mlp_forward.1} parent=11 // pred_check_branch
        %211 = sbr.rel (%p209) target = $region20
      $region19: #{mlp_forward.1} parent=11 // pred_region
        _
      $region20: #{mlp_forward.1} parent=11 // pred_fallthru
        _
      // Predicated region
      $region21: #{mlp_forward.1} parent=11 // pred_check
        %p212 = pneg %p102
      $region22: #{mlp_forward.1} parent=11 // pred_check_branch
        %214 = sbr.rel (%p212) target = $region24
      $region23: #{mlp_forward.1} parent=11 // pred_region
        _
      $region24: #{mlp_forward.1} parent=11 // pred_fallthru
        _
      // Predicated region
      $region25: #{mlp_forward.1} parent=11 // pred_check
        %p215 = pneg %p123
      $region26: #{mlp_forward.1} parent=11 // pred_check_branch
        %217 = sbr.rel (%p215) target = $region28
      $region27: #{mlp_forward.1} parent=11 // pred_region
        _
      $region28: #{mlp_forward.1} parent=11 // pred_fallthru
        _
      // Predicated region
      $region29: #{mlp_forward.1} parent=11 // pred_check
        %p218 = pneg %p144
      $region30: #{mlp_forward.1} parent=11 // pred_check_branch
        %220 = sbr.rel (%p218) target = $region32
      $region31: #{mlp_forward.1} parent=11 // pred_region
        _
      $region32: #{mlp_forward.1} parent=11 // pred_fallthru
        _
      // Predicated region
      $region33: #{mlp_forward.1} parent=11 // pred_check
        %p221 = pneg %p165
      $region34: #{mlp_forward.1} parent=11 // pred_check_branch
        %223 = sbr.rel (%p221) target = $region36
      $region35: #{mlp_forward.1} parent=11 // pred_region
        _
      $region36: #{mlp_forward.1} parent=11 // pred_fallthru
        _
    $region12: #{mlp_forward.1} parent=5 // pred_fallthru
      _
    %p224 = scmp.lt.s32.totalorder %s13, 2
    // Predicated region
    $region37: #{mlp_forward.1} parent=5 // pred_check
      %p225 = pneg %p224
    $region38: #{mlp_forward.1} parent=5 // pred_check_branch
      %227 = sbr.rel (%p225) target = $region40
    $region39: #{mlp_forward.1} parent=5 // pred_region
      // Predicated region
      $region41: #{mlp_forward.1} parent=39 // pred_check
        %p228 = pneg %p33
      $region42: #{mlp_forward.1} parent=39 // pred_check_branch
        %230 = sbr.rel (%p228) target = $region44
      $region43: #{mlp_forward.1} parent=39 // pred_region
        %s231 = smul.u32 64, %s13
        %p232 = scmp.lt.s32.totalorder %s231, 127
        %s233 = scalar_select %p232, %s231, 127
        %s234 = smul.addr %s233, 4
        %s235 = scalar_lea.vmem %s0, %s234
        %s236 = smul.u32 64, %s13
      $region44: #{mlp_forward.1} parent=39 // pred_fallthru
        _
    $region40: #{mlp_forward.1} parent=5 // pred_fallthru
      _
    %p237 = scmp.le.s32.totalorder 1, %s13
    %p238 = scmp.lt.s32.totalorder %s13, 3
    %p239 = pnand %p237, %p238
    %p240 = pneg %p239
    // Predicated region
    $region45: #{mlp_forward.1} parent=5 // pred_check
      _
    $region46: #{mlp_forward.1} parent=5 // pred_check_branch
      %242 = sbr.rel (%p239) target = $region48
    $region47: #{mlp_forward.1} parent=5 // pred_region
      %s243 = ssub.s32 %s13, 1
      %s244 = smul.u32 64, %s18
      %p245 = scmp.lt.s32.totalorder %s244, 127
      %s246 = scalar_select %p245, %s244, 127
      %s247 = smul.addr %s246, 4
      %s248 = scalar_lea.vmem %s0, %s247
      %p249 = pneg %p39
      %p250 = pneg %p36
      %p251 = pneg %p60
      %p252 = pneg %p57
      %p253 = pneg %p81
      %p254 = pneg %p78
      %p255 = pneg %p102
      %p256 = pneg %p99
      %p257 = pneg %p123
      %p258 = pneg %p120
      %p259 = pneg %p144
      %p260 = pneg %p141
      %p261 = pneg %p165
      %p262 = pneg %p162
      %p263 = pneg %p191
      %p264 = pneg %p188
      %s265 = smul.u32 64, %s18
      %p266 = scmp.lt.s32.totalorder %s265, 127
      %s267 = scalar_select %p266, %s265, 127
      %s268 = smul.addr %s267, 8
      %s269 = scalar_lea.vmem %s7, %s268
      %s270 = smul.u32 64, %s18
      %p271 = scmp.lt.s32.totalorder %s270, 127
      %s272 = scalar_select %p271, %s270, 127
      %s273 = smul.addr %s272, 4
      %s274 = scalar_lea.vmem %s0, %s273
      %s275 = smul.u32 64, %s18
      %s276 = smul.u32 64, %s18
      %p277 = scmp.lt.s32.totalorder %s276, 127
      %s278 = scalar_select %p277, %s276, 127
      %s279 = smul.addr %s278, 8
      %s280 = scalar_lea.vmem %s7, %s279
      %s281 = smul.u32 64, %s18
      %v283 = vld [vmem:[%s274] sm:$0xf]
      %v284 = vld [vmem:[%s274 + $0x4] sm:$0xf]
      %v285 = vld [vmem:[%s274 + $0x8] sm:$0xf]
      %v286 = vld [vmem:[%s274 + $0xc] sm:$0xf]
      %v287 = vld [vmem:[%s274 + $0x10] sm:$0xf]
      %v288 = vld [vmem:[%s274 + $0x14] sm:$0xf]
      %v289 = vld [vmem:[%s274 + $0x18] sm:$0xf]
      %v290 = vld [vmem:[%s274 + $0x1c] sm:$0xf]
      %v291 = vld [vmem:[%s274 + $0x20] sm:$0xf]
      %v292 = vld [vmem:[%s274 + $0x24] sm:$0xf]
      %v293 = vld [vmem:[%s274 + $0x28] sm:$0xf]
      %v294 = vld [vmem:[%s274 + $0x2c] sm:$0xf]
      %v295 = vld [vmem:[%s274 + $0x30] sm:$0xf]
      %v296 = vld [vmem:[%s274 + $0x34] sm:$0xf]
      %v297 = vld [vmem:[%s274 + $0x38] sm:$0xf]
      %v298 = vld [vmem:[%s274 + $0x3c] sm:$0xf]
      %v299 = vld [vmem:[%s274 + $0x40] sm:$0xf]
      %v300 = vld [vmem:[%s274 + $0x44] sm:$0xf]
      %v301 = vld [vmem:[%s274 + $0x48] sm:$0xf]
      %v302 = vld [vmem:[%s274 + $0x4c] sm:$0xf]
      %v303 = vld [vmem:[%s274 + $0x50] sm:$0xf]
      %v304 = vld [vmem:[%s274 + $0x54] sm:$0xf]
      %v305 = vld [vmem:[%s274 + $0x58] sm:$0xf]
      %v306 = vld [vmem:[%s274 + $0x5c] sm:$0xf]
      %v307 = vld [vmem:[%s274 + $0x60] sm:$0xf]
      %v308 = vld [vmem:[%s274 + $0x64] sm:$0xf]
      %v309 = vld [vmem:[%s274 + $0x68] sm:$0xf]
      %v310 = vld [vmem:[%s274 + $0x6c] sm:$0xf]
      %v311 = vld [vmem:[%s274 + $0x70] sm:$0xf]
      %v312 = vld [vmem:[%s274 + $0x74] sm:$0xf]
      %v313 = vld [vmem:[%s274 + $0x78] sm:$0xf]
      %v314 = vld [vmem:[%s274 + $0x7c] sm:$0xf]
      %v315 = vld [vmem:[%s274 + $0x80] sm:$0xf]
      %v316 = vld [vmem:[%s274 + $0x84] sm:$0xf]
      %v317 = vld [vmem:[%s274 + $0x88] sm:$0xf]
      %v318 = vld [vmem:[%s274 + $0x8c] sm:$0xf]
      %v319 = vld [vmem:[%s274 + $0x90] sm:$0xf]
      %v320 = vld [vmem:[%s274 + $0x94] sm:$0xf]
      %v321 = vld [vmem:[%s274 + $0x98] sm:$0xf]
      %v322 = vld [vmem:[%s274 + $0x9c] sm:$0xf]
      %v323 = vld [vmem:[%s274 + $0xa0] sm:$0xf]
      %v324 = vld [vmem:[%s274 + $0xa4] sm:$0xf]
      %v325 = vld [vmem:[%s274 + $0xa8] sm:$0xf]
      %v326 = vld [vmem:[%s274 + $0xac] sm:$0xf]
      %v327 = vld [vmem:[%s274 + $0xb0] sm:$0xf]
      %v328 = vld [vmem:[%s274 + $0xb4] sm:$0xf]
      %v329 = vld [vmem:[%s274 + $0xb8] sm:$0xf]
      %v330 = vld [vmem:[%s274 + $0xbc] sm:$0xf]
      %v331 = vld [vmem:[%s274 + $0xc0] sm:$0xf]
      %v332 = vld [vmem:[%s274 + $0xc4] sm:$0xf]
      %v333 = vld [vmem:[%s274 + $0xc8] sm:$0xf]
      %v334 = vld [vmem:[%s274 + $0xcc] sm:$0xf]
      %v335 = vld [vmem:[%s274 + $0xd0] sm:$0xf]
      %v336 = vld [vmem:[%s274 + $0xd4] sm:$0xf]
      %v337 = vld [vmem:[%s274 + $0xd8] sm:$0xf]
      %v338 = vld [vmem:[%s274 + $0xdc] sm:$0xf]
      %v339 = vld [vmem:[%s274 + $0xe0] sm:$0xf]
      %v340 = vld [vmem:[%s274 + $0xe4] sm:$0xf]
      %v341 = vld [vmem:[%s274 + $0xe8] sm:$0xf]
      %v342 = vld [vmem:[%s274 + $0xec] sm:$0xf]
      %v343 = vld [vmem:[%s274 + $0xf0] sm:$0xf]
      %v344 = vld [vmem:[%s274 + $0xf4] sm:$0xf]
      %v345 = vld [vmem:[%s274 + $0xf8] sm:$0xf]
      %v346 = vld [vmem:[%s274 + $0xfc] sm:$0xf]
      %v347 = vld [vmem:[%s1] sm:$0xff]
      %v348 = vld [vmem:[%s1 + $0x8] sm:$0xff]
      %v349 = vld [vmem:[%s1 + $0x10] sm:$0xff]
      %v350 = vld [vmem:[%s1 + $0x18] sm:$0xff]
      %v351 = vld [vmem:[%s1 + $0x20] sm:$0xff]
      %v352 = vld [vmem:[%s1 + $0x28] sm:$0xff]
      %v353 = vld [vmem:[%s1 + $0x30] sm:$0xff]
      %v354 = vld [vmem:[%s1 + $0x38] sm:$0xff]
      %v355 = vld [vmem:[%s2] sm:$0x3]
      %v357 = vperm.slane %v355, 0
      %v358 = vperm.slane %v355, 1
      %v425 = vunpack.c.l.b16 %v283
      %v426 = vunpack.c.l.b16 %v284
      %v427 = vunpack.c.l.b16 %v285
      %v428 = vunpack.c.l.b16 %v286
      %v429 = vunpack.c.l.b16 %v287
      %v430 = vunpack.c.l.b16 %v288
      %v431 = vunpack.c.l.b16 %v289
      %v432 = vunpack.c.l.b16 %v290
      %v433 = vunpack.c.l.b16 %v291
      %v434 = vunpack.c.l.b16 %v292
      %v435 = vunpack.c.l.b16 %v293
      %v436 = vunpack.c.l.b16 %v294
      %v437 = vunpack.c.l.b16 %v295
      %v438 = vunpack.c.l.b16 %v296
      %v439 = vunpack.c.l.b16 %v297
      %v440 = vunpack.c.l.b16 %v298
      %v441 = vunpack.c.l.b16 %v299
      %v442 = vunpack.c.l.b16 %v300
      %v443 = vunpack.c.l.b16 %v301
      %v444 = vunpack.c.l.b16 %v302
      %v445 = vunpack.c.l.b16 %v303
      %v446 = vunpack.c.l.b16 %v304
      %v447 = vunpack.c.l.b16 %v305
      %v448 = vunpack.c.l.b16 %v306
      %v449 = vunpack.c.l.b16 %v307
      %v450 = vunpack.c.l.b16 %v308
      %v451 = vunpack.c.l.b16 %v309
      %v452 = vunpack.c.l.b16 %v310
      %v453 = vunpack.c.l.b16 %v311
      %v454 = vunpack.c.l.b16 %v312
      %v455 = vunpack.c.l.b16 %v313
      %v456 = vunpack.c.l.b16 %v314
      %v457 = vunpack.c.l.b16 %v315
      %v458 = vunpack.c.l.b16 %v316
      %v459 = vunpack.c.l.b16 %v317
      %v460 = vunpack.c.l.b16 %v318
      %v461 = vunpack.c.l.b16 %v319
      %v462 = vunpack.c.l.b16 %v320
      %v463 = vunpack.c.l.b16 %v321
      %v464 = vunpack.c.l.b16 %v322
      %v465 = vunpack.c.l.b16 %v323
      %v466 = vunpack.c.l.b16 %v324
      %v467 = vunpack.c.l.b16 %v325
      %v468 = vunpack.c.l.b16 %v326
      %v469 = vunpack.c.l.b16 %v327
      %v470 = vunpack.c.l.b16 %v328
      %v471 = vunpack.c.l.b16 %v329
      %v472 = vunpack.c.l.b16 %v330
      %v473 = vunpack.c.l.b16 %v331
      %v474 = vunpack.c.l.b16 %v332
      %v475 = vunpack.c.l.b16 %v333
      %v476 = vunpack.c.l.b16 %v334
      %v477 = vunpack.c.l.b16 %v335
      %v478 = vunpack.c.l.b16 %v336
      %v479 = vunpack.c.l.b16 %v337
      %v480 = vunpack.c.l.b16 %v338
      %v481 = vunpack.c.l.b16 %v339
      %v482 = vunpack.c.l.b16 %v340
      %v483 = vunpack.c.l.b16 %v341
      %v484 = vunpack.c.l.b16 %v342
      %v485 = vunpack.c.l.b16 %v343
      %v486 = vunpack.c.l.b16 %v344
      %v487 = vunpack.c.l.b16 %v345
      %v488 = vunpack.c.l.b16 %v346
      %v489 = vpack.c.b16 %v426, %v425
      %v490 = vpack.c.b16 %v428, %v427
      %v491 = vpack.c.b16 %v430, %v429
      %v492 = vpack.c.b16 %v432, %v431
      %v493 = vpack.c.b16 %v434, %v433
      %v494 = vpack.c.b16 %v436, %v435
      %v495 = vpack.c.b16 %v438, %v437
      %v496 = vpack.c.b16 %v440, %v439
      %v497 = vpack.c.b16 %v442, %v441
      %v498 = vpack.c.b16 %v444, %v443
      %v499 = vpack.c.b16 %v446, %v445
      %v500 = vpack.c.b16 %v448, %v447
      %v501 = vpack.c.b16 %v450, %v449
      %v502 = vpack.c.b16 %v452, %v451
      %v503 = vpack.c.b16 %v454, %v453
      %v504 = vpack.c.b16 %v456, %v455
      %v505 = vpack.c.b16 %v458, %v457
      %v506 = vpack.c.b16 %v460, %v459
      %v507 = vpack.c.b16 %v462, %v461
      %v508 = vpack.c.b16 %v464, %v463
      %v509 = vpack.c.b16 %v466, %v465
      %v510 = vpack.c.b16 %v468, %v467
      %v511 = vpack.c.b16 %v470, %v469
      %v512 = vpack.c.b16 %v472, %v471
      %v513 = vpack.c.b16 %v474, %v473
      %v514 = vpack.c.b16 %v476, %v475
      %v515 = vpack.c.b16 %v478, %v477
      %v516 = vpack.c.b16 %v480, %v479
      %v517 = vpack.c.b16 %v482, %v481
      %v518 = vpack.c.b16 %v484, %v483
      %v519 = vpack.c.b16 %v486, %v485
      %v520 = vpack.c.b16 %v488, %v487
      %v529 = vunpack.c.l.b16 %v347
      %v530 = vunpack.c.h.b16 %v347
      %v531 = vunpack.c.l.b16 %v348
      %v532 = vunpack.c.h.b16 %v348
      %v533 = vunpack.c.l.b16 %v349
      %v534 = vunpack.c.h.b16 %v349
      %v535 = vunpack.c.l.b16 %v350
      %v536 = vunpack.c.h.b16 %v350
      %v537 = vunpack.c.l.b16 %v351
      %v538 = vunpack.c.h.b16 %v351
      %v539 = vunpack.c.l.b16 %v352
      %v540 = vunpack.c.h.b16 %v352
      %v541 = vunpack.c.l.b16 %v353
      %v542 = vunpack.c.h.b16 %v353
      %v543 = vunpack.c.l.b16 %v354
      %v544 = vunpack.c.h.b16 %v354
      %v545 = vpack.c.b16 %v531, %v529
      %v546 = vpack.c.b16 %v532, %v530
      %v547 = vpack.c.b16 %v535, %v533
      %v548 = vpack.c.b16 %v536, %v534
      %v549 = vpack.c.b16 %v539, %v537
      %v550 = vpack.c.b16 %v540, %v538
      %v551 = vpack.c.b16 %v543, %v541
      %v552 = vpack.c.b16 %v544, %v542
      %vm561 = vcmask 523264
      %v563 = vsel %vm561, %v489, 0
      %v566 = vsel %vm561, %v490, 0
      %v569 = vsel %vm561, %v491, 0
      %v572 = vsel %vm561, %v492, 0
      %v575 = vsel %vm561, %v493, 0
      %v578 = vsel %vm561, %v494, 0
      %v581 = vsel %vm561, %v495, 0
      %v584 = vsel %vm561, %v496, 0
      %v587 = vsel %vm561, %v497, 0
      %v590 = vsel %vm561, %v498, 0
      %v593 = vsel %vm561, %v499, 0
      %v596 = vsel %vm561, %v500, 0
      %v599 = vsel %vm561, %v501, 0
      %v602 = vsel %vm561, %v502, 0
      %v605 = vsel %vm561, %v503, 0
      %v608 = vsel %vm561, %v504, 0
      %v611 = vsel %vm561, %v505, 0
      %v614 = vsel %vm561, %v506, 0
      %v617 = vsel %vm561, %v507, 0
      %v620 = vsel %vm561, %v508, 0
      %v623 = vsel %vm561, %v509, 0
      %v626 = vsel %vm561, %v510, 0
      %v629 = vsel %vm561, %v511, 0
      %v632 = vsel %vm561, %v512, 0
      %v635 = vsel %vm561, %v513, 0
      %v638 = vsel %vm561, %v514, 0
      %v641 = vsel %vm561, %v515, 0
      %v644 = vsel %vm561, %v516, 0
      %v647 = vsel %vm561, %v517, 0
      %v650 = vsel %vm561, %v518, 0
      %v653 = vsel %vm561, %v519, 0
      %v656 = vsel %vm561, %v520, 0
      %658 = vmatpush.bf16.msra.mxu0 0
      %659 = vmatpush.bf16.msra.mxu0 0
      %660 = vmatpush.bf16.msra.mxu0 0
      %661 = vmatpush.bf16.msra.mxu0 0
      %662 = vmatpush.bf16.msra.mxu0 %v551
      %663 = vmatpush.bf16.msra.mxu0 %v549
      %664 = vmatpush.bf16.msra.mxu0 %v547
      %665 = vmatpush.bf16.msra.mxu0 %v545
      %666 = vmatmul.bf16.gmra.mxu0 %v563
      %v667 = vpop.f32.mrf.mxu0
      %v668 = vadd.f32 %v357, %v667
      %v669 = vpop.f32.mrf.mxu0
      %v670 = vadd.f32 %v357, %v669
      %671 = vmatmul.bf16.gmra.mxu0 %v566
      %v672 = vpop.f32.mrf.mxu0
      %v673 = vadd.f32 %v357, %v672
      %v674 = vpop.f32.mrf.mxu0
      %v675 = vadd.f32 %v357, %v674
      %676 = vmatmul.bf16.gmra.mxu0 %v569
      %v677 = vpop.f32.mrf.mxu0
      %v678 = vadd.f32 %v357, %v677
      %v679 = vpop.f32.mrf.mxu0
      %v680 = vadd.f32 %v357, %v679
      %681 = vmatmul.bf16.gmra.mxu0 %v572
      %v682 = vpop.f32.mrf.mxu0
      %v683 = vadd.f32 %v357, %v682
      %v684 = vpop.f32.mrf.mxu0
      %v685 = vadd.f32 %v357, %v684
      %686 = vmatmul.bf16.gmra.mxu0 %v575
      %v687 = vpop.f32.mrf.mxu0
      %v688 = vadd.f32 %v357, %v687
      %v689 = vpop.f32.mrf.mxu0
      %v690 = vadd.f32 %v357, %v689
      %691 = vmatmul.bf16.gmra.mxu0 %v578
      %v692 = vpop.f32.mrf.mxu0
      %v693 = vadd.f32 %v357, %v692
      %v694 = vpop.f32.mrf.mxu0
      %v695 = vadd.f32 %v357, %v694
      %696 = vmatmul.bf16.gmra.mxu0 %v581
      %v697 = vpop.f32.mrf.mxu0
      %v698 = vadd.f32 %v357, %v697
      %v699 = vpop.f32.mrf.mxu0
      %v700 = vadd.f32 %v357, %v699
      %701 = vmatmul.bf16.gmra.mxu0 %v584
      %v702 = vpop.f32.mrf.mxu0
      %v703 = vadd.f32 %v357, %v702
      %v704 = vpop.f32.mrf.mxu0
      %v705 = vadd.f32 %v357, %v704
      %706 = vmatmul.bf16.gmra.mxu0 %v587
      %v707 = vpop.f32.mrf.mxu0
      %v708 = vadd.f32 %v357, %v707
      %v709 = vpop.f32.mrf.mxu0
      %v710 = vadd.f32 %v357, %v709
      %711 = vmatmul.bf16.gmra.mxu0 %v590
      %v712 = vpop.f32.mrf.mxu0
      %v713 = vadd.f32 %v357, %v712
      %v714 = vpop.f32.mrf.mxu0
      %v715 = vadd.f32 %v357, %v714
      %716 = vmatmul.bf16.gmra.mxu0 %v593
      %v717 = vpop.f32.mrf.mxu0
      %v718 = vadd.f32 %v357, %v717
      %v719 = vpop.f32.mrf.mxu0
      %v720 = vadd.f32 %v357, %v719
      %721 = vmatmul.bf16.gmra.mxu0 %v596
      %v722 = vpop.f32.mrf.mxu0
      %v723 = vadd.f32 %v357, %v722
      %v724 = vpop.f32.mrf.mxu0
      %v725 = vadd.f32 %v357, %v724
      %726 = vmatmul.bf16.gmra.mxu0 %v599
      %v727 = vpop.f32.mrf.mxu0
      %v728 = vadd.f32 %v357, %v727
      %v729 = vpop.f32.mrf.mxu0
      %v730 = vadd.f32 %v357, %v729
      %731 = vmatmul.bf16.gmra.mxu0 %v602
      %v732 = vpop.f32.mrf.mxu0
      %v733 = vadd.f32 %v357, %v732
      %v734 = vpop.f32.mrf.mxu0
      %v735 = vadd.f32 %v357, %v734
      %736 = vmatmul.bf16.gmra.mxu0 %v605
      %v737 = vpop.f32.mrf.mxu0
      %v738 = vadd.f32 %v357, %v737
      %v739 = vpop.f32.mrf.mxu0
      %v740 = vadd.f32 %v357, %v739
      %741 = vmatmul.bf16.gmra.mxu0 %v608
      %v742 = vpop.f32.mrf.mxu0
      %v743 = vadd.f32 %v357, %v742
      %v744 = vpop.f32.mrf.mxu0
      %v745 = vadd.f32 %v357, %v744
      %746 = vmatmul.bf16.gmra.mxu0 %v611
      %v747 = vpop.f32.mrf.mxu0
      %v748 = vadd.f32 %v357, %v747
      %v749 = vpop.f32.mrf.mxu0
      %v750 = vadd.f32 %v357, %v749
      %751 = vmatmul.bf16.gmra.mxu0 %v614
      %v752 = vpop.f32.mrf.mxu0
      %v753 = vadd.f32 %v357, %v752
      %v754 = vpop.f32.mrf.mxu0
      %v755 = vadd.f32 %v357, %v754
      %756 = vmatmul.bf16.gmra.mxu0 %v617
      %v757 = vpop.f32.mrf.mxu0
      %v758 = vadd.f32 %v357, %v757
      %v759 = vpop.f32.mrf.mxu0
      %v760 = vadd.f32 %v357, %v759
      %761 = vmatmul.bf16.gmra.mxu0 %v620
      %v762 = vpop.f32.mrf.mxu0
      %v763 = vadd.f32 %v357, %v762
      %v764 = vpop.f32.mrf.mxu0
      %v765 = vadd.f32 %v357, %v764
      %766 = vmatmul.bf16.gmra.mxu0 %v623
      %v767 = vpop.f32.mrf.mxu0
      %v768 = vadd.f32 %v357, %v767
      %v769 = vpop.f32.mrf.mxu0
      %v770 = vadd.f32 %v357, %v769
      %771 = vmatmul.bf16.gmra.mxu0 %v626
      %v772 = vpop.f32.mrf.mxu0
      %v773 = vadd.f32 %v357, %v772
      %v774 = vpop.f32.mrf.mxu0
      %v775 = vadd.f32 %v357, %v774
      %776 = vmatmul.bf16.gmra.mxu0 %v629
      %v777 = vpop.f32.mrf.mxu0
      %v778 = vadd.f32 %v357, %v777
      %v779 = vpop.f32.mrf.mxu0
      %v780 = vadd.f32 %v357, %v779
      %781 = vmatmul.bf16.gmra.mxu0 %v632
      %v782 = vpop.f32.mrf.mxu0
      %v783 = vadd.f32 %v357, %v782
      %v784 = vpop.f32.mrf.mxu0
      %v785 = vadd.f32 %v357, %v784
      %786 = vmatmul.bf16.gmra.mxu0 %v635
      %v787 = vpop.f32.mrf.mxu0
      %v788 = vadd.f32 %v357, %v787
      %v789 = vpop.f32.mrf.mxu0
      %v790 = vadd.f32 %v357, %v789
      %791 = vmatmul.bf16.gmra.mxu0 %v638
      %v792 = vpop.f32.mrf.mxu0
      %v793 = vadd.f32 %v357, %v792
      %v794 = vpop.f32.mrf.mxu0
      %v795 = vadd.f32 %v357, %v794
      %796 = vmatmul.bf16.gmra.mxu0 %v641
      %v797 = vpop.f32.mrf.mxu0
      %v798 = vadd.f32 %v357, %v797
      %v799 = vpop.f32.mrf.mxu0
      %v800 = vadd.f32 %v357, %v799
      %801 = vmatmul.bf16.gmra.mxu0 %v644
      %v802 = vpop.f32.mrf.mxu0
      %v803 = vadd.f32 %v357, %v802
      %v804 = vpop.f32.mrf.mxu0
      %v805 = vadd.f32 %v357, %v804
      %806 = vmatmul.bf16.gmra.mxu0 %v647
      %v807 = vpop.f32.mrf.mxu0
      %v808 = vadd.f32 %v357, %v807
      %v809 = vpop.f32.mrf.mxu0
      %v810 = vadd.f32 %v357, %v809
      %811 = vmatmul.bf16.gmra.mxu0 %v650
      %v812 = vpop.f32.mrf.mxu0
      %v813 = vadd.f32 %v357, %v812
      %v814 = vpop.f32.mrf.mxu0
      %v815 = vadd.f32 %v357, %v814
      %816 = vmatmul.bf16.gmra.mxu0 %v653
      %v817 = vpop.f32.mrf.mxu0
      %v818 = vadd.f32 %v357, %v817
      %v819 = vpop.f32.mrf.mxu0
      %v820 = vadd.f32 %v357, %v819
      %821 = vmatmul.bf16.gmra.mxu0 %v656
      %v822 = vpop.f32.mrf.mxu0
      %v823 = vadd.f32 %v357, %v822
      %v824 = vpop.f32.mrf.mxu0
      %v825 = vadd.f32 %v357, %v824
      %826 = vdwg.mxu0
      %827 = vmatpush.bf16.msra.mxu0 0
      %828 = vmatpush.bf16.msra.mxu0 0
      %829 = vmatpush.bf16.msra.mxu0 0
      %830 = vmatpush.bf16.msra.mxu0 0
      %831 = vmatpush.bf16.msra.mxu0 %v552
      %832 = vmatpush.bf16.msra.mxu0 %v550
      %833 = vmatpush.bf16.msra.mxu0 %v548
      %834 = vmatpush.bf16.msra.mxu0 %v546
      %835 = vmatmul.bf16.gmra.mxu0 %v563
      %v836 = vpop.f32.mrf.mxu0
      %v837 = vadd.f32 %v358, %v836
      %v838 = vpop.f32.mrf.mxu0
      %v839 = vadd.f32 %v358, %v838
      %840 = vmatmul.bf16.gmra.mxu0 %v566
      %v841 = vpop.f32.mrf.mxu0
      %v842 = vadd.f32 %v358, %v841
      %v843 = vpop.f32.mrf.mxu0
      %v844 = vadd.f32 %v358, %v843
      %845 = vmatmul.bf16.gmra.mxu0 %v569
      %v846 = vpop.f32.mrf.mxu0
      %v847 = vadd.f32 %v358, %v846
      %v848 = vpop.f32.mrf.mxu0
      %v849 = vadd.f32 %v358, %v848
      %850 = vmatmul.bf16.gmra.mxu0 %v572
      %v851 = vpop.f32.mrf.mxu0
      %v852 = vadd.f32 %v358, %v851
      %v853 = vpop.f32.mrf.mxu0
      %v854 = vadd.f32 %v358, %v853
      %855 = vmatmul.bf16.gmra.mxu0 %v575
      %v856 = vpop.f32.mrf.mxu0
      %v857 = vadd.f32 %v358, %v856
      %v858 = vpop.f32.mrf.mxu0
      %v859 = vadd.f32 %v358, %v858
      %860 = vmatmul.bf16.gmra.mxu0 %v578
      %v861 = vpop.f32.mrf.mxu0
      %v862 = vadd.f32 %v358, %v861
      %v863 = vpop.f32.mrf.mxu0
      %v864 = vadd.f32 %v358, %v863
      %865 = vmatmul.bf16.gmra.mxu0 %v581
      %v866 = vpop.f32.mrf.mxu0
      %v867 = vadd.f32 %v358, %v866
      %v868 = vpop.f32.mrf.mxu0
      %v869 = vadd.f32 %v358, %v868
      %870 = vmatmul.bf16.gmra.mxu0 %v584
      %v871 = vpop.f32.mrf.mxu0
      %v872 = vadd.f32 %v358, %v871
      %v873 = vpop.f32.mrf.mxu0
      %v874 = vadd.f32 %v358, %v873
      %875 = vmatmul.bf16.gmra.mxu0 %v587
      %v876 = vpop.f32.mrf.mxu0
      %v877 = vadd.f32 %v358, %v876
      %v878 = vpop.f32.mrf.mxu0
      %v879 = vadd.f32 %v358, %v878
      %880 = vmatmul.bf16.gmra.mxu0 %v590
      %v881 = vpop.f32.mrf.mxu0
      %v882 = vadd.f32 %v358, %v881
      %v883 = vpop.f32.mrf.mxu0
      %v884 = vadd.f32 %v358, %v883
      %885 = vmatmul.bf16.gmra.mxu0 %v593
      %v886 = vpop.f32.mrf.mxu0
      %v887 = vadd.f32 %v358, %v886
      %v888 = vpop.f32.mrf.mxu0
      %v889 = vadd.f32 %v358, %v888
      %890 = vmatmul.bf16.gmra.mxu0 %v596
      %v891 = vpop.f32.mrf.mxu0
      %v892 = vadd.f32 %v358, %v891
      %v893 = vpop.f32.mrf.mxu0
      %v894 = vadd.f32 %v358, %v893
      %895 = vmatmul.bf16.gmra.mxu0 %v599
      %v896 = vpop.f32.mrf.mxu0
      %v897 = vadd.f32 %v358, %v896
      %v898 = vpop.f32.mrf.mxu0
      %v899 = vadd.f32 %v358, %v898
      %900 = vmatmul.bf16.gmra.mxu0 %v602
      %v901 = vpop.f32.mrf.mxu0
      %v902 = vadd.f32 %v358, %v901
      %v903 = vpop.f32.mrf.mxu0
      %v904 = vadd.f32 %v358, %v903
      %905 = vmatmul.bf16.gmra.mxu0 %v605
      %v906 = vpop.f32.mrf.mxu0
      %v907 = vadd.f32 %v358, %v906
      %v908 = vpop.f32.mrf.mxu0
      %v909 = vadd.f32 %v358, %v908
      %910 = vmatmul.bf16.gmra.mxu0 %v608
      %v911 = vpop.f32.mrf.mxu0
      %v912 = vadd.f32 %v358, %v911
      %v913 = vpop.f32.mrf.mxu0
      %v914 = vadd.f32 %v358, %v913
      %915 = vmatmul.bf16.gmra.mxu0 %v611
      %v916 = vpop.f32.mrf.mxu0
      %v917 = vadd.f32 %v358, %v916
      %v918 = vpop.f32.mrf.mxu0
      %v919 = vadd.f32 %v358, %v918
      %920 = vmatmul.bf16.gmra.mxu0 %v614
      %v921 = vpop.f32.mrf.mxu0
      %v922 = vadd.f32 %v358, %v921
      %v923 = vpop.f32.mrf.mxu0
      %v924 = vadd.f32 %v358, %v923
      %925 = vmatmul.bf16.gmra.mxu0 %v617
      %v926 = vpop.f32.mrf.mxu0
      %v927 = vadd.f32 %v358, %v926
      %v928 = vpop.f32.mrf.mxu0
      %v929 = vadd.f32 %v358, %v928
      %930 = vmatmul.bf16.gmra.mxu0 %v620
      %v931 = vpop.f32.mrf.mxu0
      %v932 = vadd.f32 %v358, %v931
      %v933 = vpop.f32.mrf.mxu0
      %v934 = vadd.f32 %v358, %v933
      %935 = vmatmul.bf16.gmra.mxu0 %v623
      %v936 = vpop.f32.mrf.mxu0
      %v937 = vadd.f32 %v358, %v936
      %v938 = vpop.f32.mrf.mxu0
      %v939 = vadd.f32 %v358, %v938
      %940 = vmatmul.bf16.gmra.mxu0 %v626
      %v941 = vpop.f32.mrf.mxu0
      %v942 = vadd.f32 %v358, %v941
      %v943 = vpop.f32.mrf.mxu0
      %v944 = vadd.f32 %v358, %v943
      %945 = vmatmul.bf16.gmra.mxu0 %v629
      %v946 = vpop.f32.mrf.mxu0
      %v947 = vadd.f32 %v358, %v946
      %v948 = vpop.f32.mrf.mxu0
      %v949 = vadd.f32 %v358, %v948
      %950 = vmatmul.bf16.gmra.mxu0 %v632
      %v951 = vpop.f32.mrf.mxu0
      %v952 = vadd.f32 %v358, %v951
      %v953 = vpop.f32.mrf.mxu0
      %v954 = vadd.f32 %v358, %v953
      %955 = vmatmul.bf16.gmra.mxu0 %v635
      %v956 = vpop.f32.mrf.mxu0
      %v957 = vadd.f32 %v358, %v956
      %v958 = vpop.f32.mrf.mxu0
      %v959 = vadd.f32 %v358, %v958
      %960 = vmatmul.bf16.gmra.mxu0 %v638
      %v961 = vpop.f32.mrf.mxu0
      %v962 = vadd.f32 %v358, %v961
      %v963 = vpop.f32.mrf.mxu0
      %v964 = vadd.f32 %v358, %v963
      %965 = vmatmul.bf16.gmra.mxu0 %v641
      %v966 = vpop.f32.mrf.mxu0
      %v967 = vadd.f32 %v358, %v966
      %v968 = vpop.f32.mrf.mxu0
      %v969 = vadd.f32 %v358, %v968
      %970 = vmatmul.bf16.gmra.mxu0 %v644
      %v971 = vpop.f32.mrf.mxu0
      %v972 = vadd.f32 %v358, %v971
      %v973 = vpop.f32.mrf.mxu0
      %v974 = vadd.f32 %v358, %v973
      %975 = vmatmul.bf16.gmra.mxu0 %v647
      %v976 = vpop.f32.mrf.mxu0
      %v977 = vadd.f32 %v358, %v976
      %v978 = vpop.f32.mrf.mxu0
      %v979 = vadd.f32 %v358, %v978
      %980 = vmatmul.bf16.gmra.mxu0 %v650
      %v981 = vpop.f32.mrf.mxu0
      %v982 = vadd.f32 %v358, %v981
      %v983 = vpop.f32.mrf.mxu0
      %v984 = vadd.f32 %v358, %v983
      %985 = vmatmul.bf16.gmra.mxu0 %v653
      %v986 = vpop.f32.mrf.mxu0
      %v987 = vadd.f32 %v358, %v986
      %v988 = vpop.f32.mrf.mxu0
      %v989 = vadd.f32 %v358, %v988
      %990 = vmatmul.bf16.gmra.mxu0 %v656
      %v991 = vpop.f32.mrf.mxu0
      %v992 = vadd.f32 %v358, %v991
      %v993 = vpop.f32.mrf.mxu0
      %v994 = vadd.f32 %v358, %v993
      %995 = vdwg.mxu0
      %v996 = vmax.f32 %v668, 0.0
      %v997 = vmax.f32 %v837, 0.0
      %v998 = vmax.f32 %v670, 0.0
      %v999 = vmax.f32 %v839, 0.0
      %v1000 = vmax.f32 %v673, 0.0
      %v1001 = vmax.f32 %v842, 0.0
      %v1002 = vmax.f32 %v675, 0.0
      %v1003 = vmax.f32 %v844, 0.0
      %v1004 = vmax.f32 %v678, 0.0
      %v1005 = vmax.f32 %v847, 0.0
      %v1006 = vmax.f32 %v680, 0.0
      %v1007 = vmax.f32 %v849, 0.0
      %v1008 = vmax.f32 %v683, 0.0
      %v1009 = vmax.f32 %v852, 0.0
      %v1010 = vmax.f32 %v685, 0.0
      %v1011 = vmax.f32 %v854, 0.0
      %v1012 = vmax.f32 %v688, 0.0
      %v1013 = vmax.f32 %v857, 0.0
      %v1014 = vmax.f32 %v690, 0.0
      %v1015 = vmax.f32 %v859, 0.0
      %v1016 = vmax.f32 %v693, 0.0
      %v1017 = vmax.f32 %v862, 0.0
      %v1018 = vmax.f32 %v695, 0.0
      %v1019 = vmax.f32 %v864, 0.0
      %v1020 = vmax.f32 %v698, 0.0
      %v1021 = vmax.f32 %v867, 0.0
      %v1022 = vmax.f32 %v700, 0.0
      %v1023 = vmax.f32 %v869, 0.0
      %v1024 = vmax.f32 %v703, 0.0
      %v1025 = vmax.f32 %v872, 0.0
      %v1026 = vmax.f32 %v705, 0.0
      %v1027 = vmax.f32 %v874, 0.0
      %v1028 = vmax.f32 %v708, 0.0
      %v1029 = vmax.f32 %v877, 0.0
      %v1030 = vmax.f32 %v710, 0.0
      %v1031 = vmax.f32 %v879, 0.0
      %v1032 = vmax.f32 %v713, 0.0
      %v1033 = vmax.f32 %v882, 0.0
      %v1034 = vmax.f32 %v715, 0.0
      %v1035 = vmax.f32 %v884, 0.0
      %v1036 = vmax.f32 %v718, 0.0
      %v1037 = vmax.f32 %v887, 0.0
      %v1038 = vmax.f32 %v720, 0.0
      %v1039 = vmax.f32 %v889, 0.0
      %v1040 = vmax.f32 %v723, 0.0
      %v1041 = vmax.f32 %v892, 0.0
      %v1042 = vmax.f32 %v725, 0.0
      %v1043 = vmax.f32 %v894, 0.0
      %v1044 = vmax.f32 %v728, 0.0
      %v1045 = vmax.f32 %v897, 0.0
      %v1046 = vmax.f32 %v730, 0.0
      %v1047 = vmax.f32 %v899, 0.0
      %v1048 = vmax.f32 %v733, 0.0
      %v1049 = vmax.f32 %v902, 0.0
      %v1050 = vmax.f32 %v735, 0.0
      %v1051 = vmax.f32 %v904, 0.0
      %v1052 = vmax.f32 %v738, 0.0
      %v1053 = vmax.f32 %v907, 0.0
      %v1054 = vmax.f32 %v740, 0.0
      %v1055 = vmax.f32 %v909, 0.0
      %v1056 = vmax.f32 %v743, 0.0
      %v1057 = vmax.f32 %v912, 0.0
      %v1058 = vmax.f32 %v745, 0.0
      %v1059 = vmax.f32 %v914, 0.0
      %v1060 = vmax.f32 %v748, 0.0
      %v1061 = vmax.f32 %v917, 0.0
      %v1062 = vmax.f32 %v750, 0.0
      %v1063 = vmax.f32 %v919, 0.0
      %v1064 = vmax.f32 %v753, 0.0
      %v1065 = vmax.f32 %v922, 0.0
      %v1066 = vmax.f32 %v755, 0.0
      %v1067 = vmax.f32 %v924, 0.0
      %v1068 = vmax.f32 %v758, 0.0
      %v1069 = vmax.f32 %v927, 0.0
      %v1070 = vmax.f32 %v760, 0.0
      %v1071 = vmax.f32 %v929, 0.0
      %v1072 = vmax.f32 %v763, 0.0
      %v1073 = vmax.f32 %v932, 0.0
      %v1074 = vmax.f32 %v765, 0.0
      %v1075 = vmax.f32 %v934, 0.0
      %v1076 = vmax.f32 %v768, 0.0
      %v1077 = vmax.f32 %v937, 0.0
      %v1078 = vmax.f32 %v770, 0.0
      %v1079 = vmax.f32 %v939, 0.0
      %v1080 = vmax.f32 %v773, 0.0
      %v1081 = vmax.f32 %v942, 0.0
      %v1082 = vmax.f32 %v775, 0.0
      %v1083 = vmax.f32 %v944, 0.0
      %v1084 = vmax.f32 %v778, 0.0
      %v1085 = vmax.f32 %v947, 0.0
      %v1086 = vmax.f32 %v780, 0.0
      %v1087 = vmax.f32 %v949, 0.0
      %v1088 = vmax.f32 %v783, 0.0
      %v1089 = vmax.f32 %v952, 0.0
      %v1090 = vmax.f32 %v785, 0.0
      %v1091 = vmax.f32 %v954, 0.0
      %v1092 = vmax.f32 %v788, 0.0
      %v1093 = vmax.f32 %v957, 0.0
      %v1094 = vmax.f32 %v790, 0.0
      %v1095 = vmax.f32 %v959, 0.0
      %v1096 = vmax.f32 %v793, 0.0
      %v1097 = vmax.f32 %v962, 0.0
      %v1098 = vmax.f32 %v795, 0.0
      %v1099 = vmax.f32 %v964, 0.0
      %v1100 = vmax.f32 %v798, 0.0
      %v1101 = vmax.f32 %v967, 0.0
      %v1102 = vmax.f32 %v800, 0.0
      %v1103 = vmax.f32 %v969, 0.0
      %v1104 = vmax.f32 %v803, 0.0
      %v1105 = vmax.f32 %v972, 0.0
      %v1106 = vmax.f32 %v805, 0.0
      %v1107 = vmax.f32 %v974, 0.0
      %v1108 = vmax.f32 %v808, 0.0
      %v1109 = vmax.f32 %v977, 0.0
      %v1110 = vmax.f32 %v810, 0.0
      %v1111 = vmax.f32 %v979, 0.0
      %v1112 = vmax.f32 %v813, 0.0
      %v1113 = vmax.f32 %v982, 0.0
      %v1114 = vmax.f32 %v815, 0.0
      %v1115 = vmax.f32 %v984, 0.0
      %v1116 = vmax.f32 %v818, 0.0
      %v1117 = vmax.f32 %v987, 0.0
      %v1118 = vmax.f32 %v820, 0.0
      %v1119 = vmax.f32 %v989, 0.0
      %v1120 = vmax.f32 %v823, 0.0
      %v1121 = vmax.f32 %v992, 0.0
      %v1122 = vmax.f32 %v825, 0.0
      %v1123 = vmax.f32 %v994, 0.0
      %v1124 = vpack.c.bf16 %v998, %v996
      %v1125 = vpack.c.bf16 %v999, %v997
      %v1126 = vpack.c.bf16 %v1002, %v1000
      %v1127 = vpack.c.bf16 %v1003, %v1001
      %v1128 = vpack.c.bf16 %v1006, %v1004
      %v1129 = vpack.c.bf16 %v1007, %v1005
      %v1130 = vpack.c.bf16 %v1010, %v1008
      %v1131 = vpack.c.bf16 %v1011, %v1009
      %v1132 = vpack.c.bf16 %v1014, %v1012
      %v1133 = vpack.c.bf16 %v1015, %v1013
      %v1134 = vpack.c.bf16 %v1018, %v1016
      %v1135 = vpack.c.bf16 %v1019, %v1017
      %v1136 = vpack.c.bf16 %v1022, %v1020
      %v1137 = vpack.c.bf16 %v1023, %v1021
      %v1138 = vpack.c.bf16 %v1026, %v1024
      %v1139 = vpack.c.bf16 %v1027, %v1025
      %v1140 = vpack.c.bf16 %v1030, %v1028
      %v1141 = vpack.c.bf16 %v1031, %v1029
      %v1142 = vpack.c.bf16 %v1034, %v1032
      %v1143 = vpack.c.bf16 %v1035, %v1033
      %v1144 = vpack.c.bf16 %v1038, %v1036
      %v1145 = vpack.c.bf16 %v1039, %v1037
      %v1146 = vpack.c.bf16 %v1042, %v1040
      %v1147 = vpack.c.bf16 %v1043, %v1041
      %v1148 = vpack.c.bf16 %v1046, %v1044
      %v1149 = vpack.c.bf16 %v1047, %v1045
      %v1150 = vpack.c.bf16 %v1050, %v1048
      %v1151 = vpack.c.bf16 %v1051, %v1049
      %v1152 = vpack.c.bf16 %v1054, %v1052
      %v1153 = vpack.c.bf16 %v1055, %v1053
      %v1154 = vpack.c.bf16 %v1058, %v1056
      %v1155 = vpack.c.bf16 %v1059, %v1057
      %v1156 = vpack.c.bf16 %v1062, %v1060
      %v1157 = vpack.c.bf16 %v1063, %v1061
      %v1158 = vpack.c.bf16 %v1066, %v1064
      %v1159 = vpack.c.bf16 %v1067, %v1065
      %v1160 = vpack.c.bf16 %v1070, %v1068
      %v1161 = vpack.c.bf16 %v1071, %v1069
      %v1162 = vpack.c.bf16 %v1074, %v1072
      %v1163 = vpack.c.bf16 %v1075, %v1073
      %v1164 = vpack.c.bf16 %v1078, %v1076
      %v1165 = vpack.c.bf16 %v1079, %v1077
      %v1166 = vpack.c.bf16 %v1082, %v1080
      %v1167 = vpack.c.bf16 %v1083, %v1081
      %v1168 = vpack.c.bf16 %v1086, %v1084
      %v1169 = vpack.c.bf16 %v1087, %v1085
      %v1170 = vpack.c.bf16 %v1090, %v1088
      %v1171 = vpack.c.bf16 %v1091, %v1089
      %v1172 = vpack.c.bf16 %v1094, %v1092
      %v1173 = vpack.c.bf16 %v1095, %v1093
      %v1174 = vpack.c.bf16 %v1098, %v1096
      %v1175 = vpack.c.bf16 %v1099, %v1097
      %v1176 = vpack.c.bf16 %v1102, %v1100
      %v1177 = vpack.c.bf16 %v1103, %v1101
      %v1178 = vpack.c.bf16 %v1106, %v1104
      %v1179 = vpack.c.bf16 %v1107, %v1105
      %v1180 = vpack.c.bf16 %v1110, %v1108
      %v1181 = vpack.c.bf16 %v1111, %v1109
      %v1182 = vpack.c.bf16 %v1114, %v1112
      %v1183 = vpack.c.bf16 %v1115, %v1113
      %v1184 = vpack.c.bf16 %v1118, %v1116
      %v1185 = vpack.c.bf16 %v1119, %v1117
      %v1186 = vpack.c.bf16 %v1122, %v1120
      %v1187 = vpack.c.bf16 %v1123, %v1121
      %v1188 = vld [vmem:[%s3] sm:$0xf]
      %v1189 = vld [vmem:[%s3 + $0x4] sm:$0xf]
      %v1190 = vld [vmem:[%s3 + $0x8] sm:$0xf]
      %v1191 = vld [vmem:[%s3 + $0xc] sm:$0xf]
      %v1192 = vld [vmem:[%s3 + $0x10] sm:$0xf]
      %v1193 = vld [vmem:[%s3 + $0x14] sm:$0xf]
      %v1194 = vld [vmem:[%s3 + $0x18] sm:$0xf]
      %v1195 = vld [vmem:[%s3 + $0x1c] sm:$0xf]
      %v1196 = vld [vmem:[%s3 + $0x20] sm:$0xf]
      %v1197 = vld [vmem:[%s3 + $0x24] sm:$0xf]
      %v1198 = vld [vmem:[%s3 + $0x28] sm:$0xf]
      %v1199 = vld [vmem:[%s3 + $0x2c] sm:$0xf]
      %v1200 = vld [vmem:[%s3 + $0x30] sm:$0xf]
      %v1201 = vld [vmem:[%s3 + $0x34] sm:$0xf]
      %v1202 = vld [vmem:[%s3 + $0x38] sm:$0xf]
      %v1203 = vld [vmem:[%s3 + $0x3c] sm:$0xf]
      %v1204 = vld [vmem:[%s3 + $0x40] sm:$0xf]
      %v1205 = vld [vmem:[%s3 + $0x44] sm:$0xf]
      %v1206 = vld [vmem:[%s3 + $0x48] sm:$0xf]
      %v1207 = vld [vmem:[%s3 + $0x4c] sm:$0xf]
      %v1208 = vld [vmem:[%s3 + $0x50] sm:$0xf]
      %v1209 = vld [vmem:[%s3 + $0x54] sm:$0xf]
      %v1210 = vld [vmem:[%s3 + $0x58] sm:$0xf]
      %v1211 = vld [vmem:[%s3 + $0x5c] sm:$0xf]
      %v1212 = vld [vmem:[%s3 + $0x60] sm:$0xf]
      %v1213 = vld [vmem:[%s3 + $0x64] sm:$0xf]
      %v1214 = vld [vmem:[%s3 + $0x68] sm:$0xf]
      %v1215 = vld [vmem:[%s3 + $0x6c] sm:$0xf]
      %v1216 = vld [vmem:[%s3 + $0x70] sm:$0xf]
      %v1217 = vld [vmem:[%s3 + $0x74] sm:$0xf]
      %v1218 = vld [vmem:[%s3 + $0x78] sm:$0xf]
      %v1219 = vld [vmem:[%s3 + $0x7c] sm:$0xf]
      %v1220 = vld [vmem:[%s4] sm:$0x1]
      %v1222 = vperm.slane %v1220, 0
      %v1256 = vunpack.c.l.b16 %v1188
      %v1257 = vunpack.c.l.b16 %v1189
      %v1258 = vunpack.c.l.b16 %v1190
      %v1259 = vunpack.c.l.b16 %v1191
      %v1260 = vunpack.c.l.b16 %v1192
      %v1261 = vunpack.c.l.b16 %v1193
      %v1262 = vunpack.c.l.b16 %v1194
      %v1263 = vunpack.c.l.b16 %v1195
      %v1264 = vunpack.c.l.b16 %v1196
      %v1265 = vunpack.c.l.b16 %v1197
      %v1266 = vunpack.c.l.b16 %v1198
      %v1267 = vunpack.c.l.b16 %v1199
      %v1268 = vunpack.c.l.b16 %v1200
      %v1269 = vunpack.c.l.b16 %v1201
      %v1270 = vunpack.c.l.b16 %v1202
      %v1271 = vunpack.c.l.b16 %v1203
      %v1272 = vunpack.c.l.b16 %v1204
      %v1273 = vunpack.c.l.b16 %v1205
      %v1274 = vunpack.c.l.b16 %v1206
      %v1275 = vunpack.c.l.b16 %v1207
      %v1276 = vunpack.c.l.b16 %v1208
      %v1277 = vunpack.c.l.b16 %v1209
      %v1278 = vunpack.c.l.b16 %v1210
      %v1279 = vunpack.c.l.b16 %v1211
      %v1280 = vunpack.c.l.b16 %v1212
      %v1281 = vunpack.c.l.b16 %v1213
      %v1282 = vunpack.c.l.b16 %v1214
      %v1283 = vunpack.c.l.b16 %v1215
      %v1284 = vunpack.c.l.b16 %v1216
      %v1285 = vunpack.c.l.b16 %v1217
      %v1286 = vunpack.c.l.b16 %v1218
      %v1287 = vunpack.c.l.b16 %v1219
      %v1288 = vpack.c.b16 %v1257, %v1256
      %v1289 = vpack.c.b16 %v1259, %v1258
      %v1290 = vpack.c.b16 %v1261, %v1260
      %v1291 = vpack.c.b16 %v1263, %v1262
      %v1292 = vpack.c.b16 %v1265, %v1264
      %v1293 = vpack.c.b16 %v1267, %v1266
      %v1294 = vpack.c.b16 %v1269, %v1268
      %v1295 = vpack.c.b16 %v1271, %v1270
      %v1296 = vpack.c.b16 %v1273, %v1272
      %v1297 = vpack.c.b16 %v1275, %v1274
      %v1298 = vpack.c.b16 %v1277, %v1276
      %v1299 = vpack.c.b16 %v1279, %v1278
      %v1300 = vpack.c.b16 %v1281, %v1280
      %v1301 = vpack.c.b16 %v1283, %v1282
      %v1302 = vpack.c.b16 %v1285, %v1284
      %v1303 = vpack.c.b16 %v1287, %v1286
      %1320 = vmatpush.bf16.msra.mxu0 %v1295
      %1321 = vmatpush.bf16.msra.mxu0 %v1294
      %1322 = vmatpush.bf16.msra.mxu0 %v1293
      %1323 = vmatpush.bf16.msra.mxu0 %v1292
      %1324 = vmatpush.bf16.msra.mxu0 %v1291
      %1325 = vmatpush.bf16.msra.mxu0 %v1290
      %1326 = vmatpush.bf16.msra.mxu0 %v1289
      %1327 = vmatpush.bf16.msra.mxu0 %v1288
      %1328 = vmatmul.bf16.gmra.mxu0 %v1124
      %v1329 = vpop.f32.mrf.mxu0
      %v1330 = vadd.f32 %v1222, %v1329
      %v1331 = vpop.f32.mrf.mxu0
      %v1332 = vadd.f32 %v1222, %v1331
      %1333 = vmatmul.bf16.gmra.mxu0 %v1126
      %v1334 = vpop.f32.mrf.mxu0
      %v1335 = vadd.f32 %v1222, %v1334
      %v1336 = vpop.f32.mrf.mxu0
      %v1337 = vadd.f32 %v1222, %v1336
      %1338 = vmatmul.bf16.gmra.mxu0 %v1128
      %v1339 = vpop.f32.mrf.mxu0
      %v1340 = vadd.f32 %v1222, %v1339
      %v1341 = vpop.f32.mrf.mxu0
      %v1342 = vadd.f32 %v1222, %v1341
      %1343 = vmatmul.bf16.gmra.mxu0 %v1130
      %v1344 = vpop.f32.mrf.mxu0
      %v1345 = vadd.f32 %v1222, %v1344
      %v1346 = vpop.f32.mrf.mxu0
      %v1347 = vadd.f32 %v1222, %v1346
      %1348 = vmatmul.bf16.gmra.mxu0 %v1132
      %v1349 = vpop.f32.mrf.mxu0
      %v1350 = vadd.f32 %v1222, %v1349
      %v1351 = vpop.f32.mrf.mxu0
      %v1352 = vadd.f32 %v1222, %v1351
      %1353 = vmatmul.bf16.gmra.mxu0 %v1134
      %v1354 = vpop.f32.mrf.mxu0
      %v1355 = vadd.f32 %v1222, %v1354
      %v1356 = vpop.f32.mrf.mxu0
      %v1357 = vadd.f32 %v1222, %v1356
      %1358 = vmatmul.bf16.gmra.mxu0 %v1136
      %v1359 = vpop.f32.mrf.mxu0
      %v1360 = vadd.f32 %v1222, %v1359
      %v1361 = vpop.f32.mrf.mxu0
      %v1362 = vadd.f32 %v1222, %v1361
      %1363 = vmatmul.bf16.gmra.mxu0 %v1138
      %v1364 = vpop.f32.mrf.mxu0
      %v1365 = vadd.f32 %v1222, %v1364
      %v1366 = vpop.f32.mrf.mxu0
      %v1367 = vadd.f32 %v1222, %v1366
      %1368 = vmatmul.bf16.gmra.mxu0 %v1140
      %v1369 = vpop.f32.mrf.mxu0
      %v1370 = vadd.f32 %v1222, %v1369
      %v1371 = vpop.f32.mrf.mxu0
      %v1372 = vadd.f32 %v1222, %v1371
      %1373 = vmatmul.bf16.gmra.mxu0 %v1142
      %v1374 = vpop.f32.mrf.mxu0
      %v1375 = vadd.f32 %v1222, %v1374
      %v1376 = vpop.f32.mrf.mxu0
      %v1377 = vadd.f32 %v1222, %v1376
      %1378 = vmatmul.bf16.gmra.mxu0 %v1144
      %v1379 = vpop.f32.mrf.mxu0
      %v1380 = vadd.f32 %v1222, %v1379
      %v1381 = vpop.f32.mrf.mxu0
      %v1382 = vadd.f32 %v1222, %v1381
      %1383 = vmatmul.bf16.gmra.mxu0 %v1146
      %v1384 = vpop.f32.mrf.mxu0
      %v1385 = vadd.f32 %v1222, %v1384
      %v1386 = vpop.f32.mrf.mxu0
      %v1387 = vadd.f32 %v1222, %v1386
      %1388 = vmatmul.bf16.gmra.mxu0 %v1148
      %v1389 = vpop.f32.mrf.mxu0
      %v1390 = vadd.f32 %v1222, %v1389
      %v1391 = vpop.f32.mrf.mxu0
      %v1392 = vadd.f32 %v1222, %v1391
      %1393 = vmatmul.bf16.gmra.mxu0 %v1150
      %v1394 = vpop.f32.mrf.mxu0
      %v1395 = vadd.f32 %v1222, %v1394
      %v1396 = vpop.f32.mrf.mxu0
      %v1397 = vadd.f32 %v1222, %v1396
      %1398 = vmatmul.bf16.gmra.mxu0 %v1152
      %v1399 = vpop.f32.mrf.mxu0
      %v1400 = vadd.f32 %v1222, %v1399
      %v1401 = vpop.f32.mrf.mxu0
      %v1402 = vadd.f32 %v1222, %v1401
      %1403 = vmatmul.bf16.gmra.mxu0 %v1154
      %v1404 = vpop.f32.mrf.mxu0
      %v1405 = vadd.f32 %v1222, %v1404
      %v1406 = vpop.f32.mrf.mxu0
      %v1407 = vadd.f32 %v1222, %v1406
      %1408 = vmatmul.bf16.gmra.mxu0 %v1156
      %v1409 = vpop.f32.mrf.mxu0
      %v1410 = vadd.f32 %v1222, %v1409
      %v1411 = vpop.f32.mrf.mxu0
      %v1412 = vadd.f32 %v1222, %v1411
      %1413 = vmatmul.bf16.gmra.mxu0 %v1158
      %v1414 = vpop.f32.mrf.mxu0
      %v1415 = vadd.f32 %v1222, %v1414
      %v1416 = vpop.f32.mrf.mxu0
      %v1417 = vadd.f32 %v1222, %v1416
      %1418 = vmatmul.bf16.gmra.mxu0 %v1160
      %v1419 = vpop.f32.mrf.mxu0
      %v1420 = vadd.f32 %v1222, %v1419
      %v1421 = vpop.f32.mrf.mxu0
      %v1422 = vadd.f32 %v1222, %v1421
      %1423 = vmatmul.bf16.gmra.mxu0 %v1162
      %v1424 = vpop.f32.mrf.mxu0
      %v1425 = vadd.f32 %v1222, %v1424
      %v1426 = vpop.f32.mrf.mxu0
      %v1427 = vadd.f32 %v1222, %v1426
      %1428 = vmatmul.bf16.gmra.mxu0 %v1164
      %v1429 = vpop.f32.mrf.mxu0
      %v1430 = vadd.f32 %v1222, %v1429
      %v1431 = vpop.f32.mrf.mxu0
      %v1432 = vadd.f32 %v1222, %v1431
      %1433 = vmatmul.bf16.gmra.mxu0 %v1166
      %v1434 = vpop.f32.mrf.mxu0
      %v1435 = vadd.f32 %v1222, %v1434
      %v1436 = vpop.f32.mrf.mxu0
      %v1437 = vadd.f32 %v1222, %v1436
      %1438 = vmatmul.bf16.gmra.mxu0 %v1168
      %v1439 = vpop.f32.mrf.mxu0
      %v1440 = vadd.f32 %v1222, %v1439
      %v1441 = vpop.f32.mrf.mxu0
      %v1442 = vadd.f32 %v1222, %v1441
      %1443 = vmatmul.bf16.gmra.mxu0 %v1170
      %v1444 = vpop.f32.mrf.mxu0
      %v1445 = vadd.f32 %v1222, %v1444
      %v1446 = vpop.f32.mrf.mxu0
      %v1447 = vadd.f32 %v1222, %v1446
      %1448 = vmatmul.bf16.gmra.mxu0 %v1172
      %v1449 = vpop.f32.mrf.mxu0
      %v1450 = vadd.f32 %v1222, %v1449
      %v1451 = vpop.f32.mrf.mxu0
      %v1452 = vadd.f32 %v1222, %v1451
      %1453 = vmatmul.bf16.gmra.mxu0 %v1174
      %v1454 = vpop.f32.mrf.mxu0
      %v1455 = vadd.f32 %v1222, %v1454
      %v1456 = vpop.f32.mrf.mxu0
      %v1457 = vadd.f32 %v1222, %v1456
      %1458 = vmatmul.bf16.gmra.mxu0 %v1176
      %v1459 = vpop.f32.mrf.mxu0
      %v1460 = vadd.f32 %v1222, %v1459
      %v1461 = vpop.f32.mrf.mxu0
      %v1462 = vadd.f32 %v1222, %v1461
      %1463 = vmatmul.bf16.gmra.mxu0 %v1178
      %v1464 = vpop.f32.mrf.mxu0
      %v1465 = vadd.f32 %v1222, %v1464
      %v1466 = vpop.f32.mrf.mxu0
      %v1467 = vadd.f32 %v1222, %v1466
      %1468 = vmatmul.bf16.gmra.mxu0 %v1180
      %v1469 = vpop.f32.mrf.mxu0
      %v1470 = vadd.f32 %v1222, %v1469
      %v1471 = vpop.f32.mrf.mxu0
      %v1472 = vadd.f32 %v1222, %v1471
      %1473 = vmatmul.bf16.gmra.mxu0 %v1182
      %v1474 = vpop.f32.mrf.mxu0
      %v1475 = vadd.f32 %v1222, %v1474
      %v1476 = vpop.f32.mrf.mxu0
      %v1477 = vadd.f32 %v1222, %v1476
      %1478 = vmatmul.bf16.gmra.mxu0 %v1184
      %v1479 = vpop.f32.mrf.mxu0
      %v1480 = vadd.f32 %v1222, %v1479
      %v1481 = vpop.f32.mrf.mxu0
      %v1482 = vadd.f32 %v1222, %v1481
      %1483 = vmatmul.bf16.gmra.mxu0 %v1186
      %v1484 = vpop.f32.mrf.mxu0
      %v1485 = vadd.f32 %v1222, %v1484
      %v1486 = vpop.f32.mrf.mxu0
      %v1487 = vadd.f32 %v1222, %v1486
      %1488 = vdwg.mxu0
      %1489 = vmatpush.bf16.msra.mxu0 %v1303
      %1490 = vmatpush.bf16.msra.mxu0 %v1302
      %1491 = vmatpush.bf16.msra.mxu0 %v1301
      %1492 = vmatpush.bf16.msra.mxu0 %v1300
      %1493 = vmatpush.bf16.msra.mxu0 %v1299
      %1494 = vmatpush.bf16.msra.mxu0 %v1298
      %1495 = vmatpush.bf16.msra.mxu0 %v1297
      %1496 = vmatpush.bf16.msra.mxu0 %v1296
      %1497 = vmatmul.bf16.gmra.mxu0 %v1125
      %v1498 = vpop.f32.mrf.mxu0
      %v1499 = vadd.f32 %v1330, %v1498
      %v1500 = vpop.f32.mrf.mxu0
      %v1501 = vadd.f32 %v1332, %v1500
      %1502 = vmatmul.bf16.gmra.mxu0 %v1127
      %v1503 = vpop.f32.mrf.mxu0
      %v1504 = vadd.f32 %v1335, %v1503
      %v1505 = vpop.f32.mrf.mxu0
      %v1506 = vadd.f32 %v1337, %v1505
      %1507 = vmatmul.bf16.gmra.mxu0 %v1129
      %v1508 = vpop.f32.mrf.mxu0
      %v1509 = vadd.f32 %v1340, %v1508
      %v1510 = vpop.f32.mrf.mxu0
      %v1511 = vadd.f32 %v1342, %v1510
      %1512 = vmatmul.bf16.gmra.mxu0 %v1131
      %v1513 = vpop.f32.mrf.mxu0
      %v1514 = vadd.f32 %v1345, %v1513
      %v1515 = vpop.f32.mrf.mxu0
      %v1516 = vadd.f32 %v1347, %v1515
      %1517 = vmatmul.bf16.gmra.mxu0 %v1133
      %v1518 = vpop.f32.mrf.mxu0
      %v1519 = vadd.f32 %v1350, %v1518
      %v1520 = vpop.f32.mrf.mxu0
      %v1521 = vadd.f32 %v1352, %v1520
      %1522 = vmatmul.bf16.gmra.mxu0 %v1135
      %v1523 = vpop.f32.mrf.mxu0
      %v1524 = vadd.f32 %v1355, %v1523
      %v1525 = vpop.f32.mrf.mxu0
      %v1526 = vadd.f32 %v1357, %v1525
      %1527 = vmatmul.bf16.gmra.mxu0 %v1137
      %v1528 = vpop.f32.mrf.mxu0
      %v1529 = vadd.f32 %v1360, %v1528
      %v1530 = vpop.f32.mrf.mxu0
      %v1531 = vadd.f32 %v1362, %v1530
      %1532 = vmatmul.bf16.gmra.mxu0 %v1139
      %v1533 = vpop.f32.mrf.mxu0
      %v1534 = vadd.f32 %v1365, %v1533
      %v1535 = vpop.f32.mrf.mxu0
      %v1536 = vadd.f32 %v1367, %v1535
      %1537 = vmatmul.bf16.gmra.mxu0 %v1141
      %v1538 = vpop.f32.mrf.mxu0
      %v1539 = vadd.f32 %v1370, %v1538
      %v1540 = vpop.f32.mrf.mxu0
      %v1541 = vadd.f32 %v1372, %v1540
      %1542 = vmatmul.bf16.gmra.mxu0 %v1143
      %v1543 = vpop.f32.mrf.mxu0
      %v1544 = vadd.f32 %v1375, %v1543
      %v1545 = vpop.f32.mrf.mxu0
      %v1546 = vadd.f32 %v1377, %v1545
      %1547 = vmatmul.bf16.gmra.mxu0 %v1145
      %v1548 = vpop.f32.mrf.mxu0
      %v1549 = vadd.f32 %v1380, %v1548
      %v1550 = vpop.f32.mrf.mxu0
      %v1551 = vadd.f32 %v1382, %v1550
      %1552 = vmatmul.bf16.gmra.mxu0 %v1147
      %v1553 = vpop.f32.mrf.mxu0
      %v1554 = vadd.f32 %v1385, %v1553
      %v1555 = vpop.f32.mrf.mxu0
      %v1556 = vadd.f32 %v1387, %v1555
      %1557 = vmatmul.bf16.gmra.mxu0 %v1149
      %v1558 = vpop.f32.mrf.mxu0
      %v1559 = vadd.f32 %v1390, %v1558
      %v1560 = vpop.f32.mrf.mxu0
      %v1561 = vadd.f32 %v1392, %v1560
      %1562 = vmatmul.bf16.gmra.mxu0 %v1151
      %v1563 = vpop.f32.mrf.mxu0
      %v1564 = vadd.f32 %v1395, %v1563
      %v1565 = vpop.f32.mrf.mxu0
      %v1566 = vadd.f32 %v1397, %v1565
      %1567 = vmatmul.bf16.gmra.mxu0 %v1153
      %v1568 = vpop.f32.mrf.mxu0
      %v1569 = vadd.f32 %v1400, %v1568
      %v1570 = vpop.f32.mrf.mxu0
      %v1571 = vadd.f32 %v1402, %v1570
      %1572 = vmatmul.bf16.gmra.mxu0 %v1155
      %v1573 = vpop.f32.mrf.mxu0
      %v1574 = vadd.f32 %v1405, %v1573
      %v1575 = vpop.f32.mrf.mxu0
      %v1576 = vadd.f32 %v1407, %v1575
      %1577 = vmatmul.bf16.gmra.mxu0 %v1157
      %v1578 = vpop.f32.mrf.mxu0
      %v1579 = vadd.f32 %v1410, %v1578
      %v1580 = vpop.f32.mrf.mxu0
      %v1581 = vadd.f32 %v1412, %v1580
      %1582 = vmatmul.bf16.gmra.mxu0 %v1159
      %v1583 = vpop.f32.mrf.mxu0
      %v1584 = vadd.f32 %v1415, %v1583
      %v1585 = vpop.f32.mrf.mxu0
      %v1586 = vadd.f32 %v1417, %v1585
      %1587 = vmatmul.bf16.gmra.mxu0 %v1161
      %v1588 = vpop.f32.mrf.mxu0
      %v1589 = vadd.f32 %v1420, %v1588
      %v1590 = vpop.f32.mrf.mxu0
      %v1591 = vadd.f32 %v1422, %v1590
      %1592 = vmatmul.bf16.gmra.mxu0 %v1163
      %v1593 = vpop.f32.mrf.mxu0
      %v1594 = vadd.f32 %v1425, %v1593
      %v1595 = vpop.f32.mrf.mxu0
      %v1596 = vadd.f32 %v1427, %v1595
      %1597 = vmatmul.bf16.gmra.mxu0 %v1165
      %v1598 = vpop.f32.mrf.mxu0
      %v1599 = vadd.f32 %v1430, %v1598
      %v1600 = vpop.f32.mrf.mxu0
      %v1601 = vadd.f32 %v1432, %v1600
      %1602 = vmatmul.bf16.gmra.mxu0 %v1167
      %v1603 = vpop.f32.mrf.mxu0
      %v1604 = vadd.f32 %v1435, %v1603
      %v1605 = vpop.f32.mrf.mxu0
      %v1606 = vadd.f32 %v1437, %v1605
      %1607 = vmatmul.bf16.gmra.mxu0 %v1169
      %v1608 = vpop.f32.mrf.mxu0
      %v1609 = vadd.f32 %v1440, %v1608
      %v1610 = vpop.f32.mrf.mxu0
      %v1611 = vadd.f32 %v1442, %v1610
      %1612 = vmatmul.bf16.gmra.mxu0 %v1171
      %v1613 = vpop.f32.mrf.mxu0
      %v1614 = vadd.f32 %v1445, %v1613
      %v1615 = vpop.f32.mrf.mxu0
      %v1616 = vadd.f32 %v1447, %v1615
      %1617 = vmatmul.bf16.gmra.mxu0 %v1173
      %v1618 = vpop.f32.mrf.mxu0
      %v1619 = vadd.f32 %v1450, %v1618
      %v1620 = vpop.f32.mrf.mxu0
      %v1621 = vadd.f32 %v1452, %v1620
      %1622 = vmatmul.bf16.gmra.mxu0 %v1175
      %v1623 = vpop.f32.mrf.mxu0
      %v1624 = vadd.f32 %v1455, %v1623
      %v1625 = vpop.f32.mrf.mxu0
      %v1626 = vadd.f32 %v1457, %v1625
      %1627 = vmatmul.bf16.gmra.mxu0 %v1177
      %v1628 = vpop.f32.mrf.mxu0
      %v1629 = vadd.f32 %v1460, %v1628
      %v1630 = vpop.f32.mrf.mxu0
      %v1631 = vadd.f32 %v1462, %v1630
      %1632 = vmatmul.bf16.gmra.mxu0 %v1179
      %v1633 = vpop.f32.mrf.mxu0
      %v1634 = vadd.f32 %v1465, %v1633
      %v1635 = vpop.f32.mrf.mxu0
      %v1636 = vadd.f32 %v1467, %v1635
      %1637 = vmatmul.bf16.gmra.mxu0 %v1181
      %v1638 = vpop.f32.mrf.mxu0
      %v1639 = vadd.f32 %v1470, %v1638
      %v1640 = vpop.f32.mrf.mxu0
      %v1641 = vadd.f32 %v1472, %v1640
      %1642 = vmatmul.bf16.gmra.mxu0 %v1183
      %v1643 = vpop.f32.mrf.mxu0
      %v1644 = vadd.f32 %v1475, %v1643
      %v1645 = vpop.f32.mrf.mxu0
      %v1646 = vadd.f32 %v1477, %v1645
      %1647 = vmatmul.bf16.gmra.mxu0 %v1185
      %v1648 = vpop.f32.mrf.mxu0
      %v1649 = vadd.f32 %v1480, %v1648
      %v1650 = vpop.f32.mrf.mxu0
      %v1651 = vadd.f32 %v1482, %v1650
      %1652 = vmatmul.bf16.gmra.mxu0 %v1187
      %v1653 = vpop.f32.mrf.mxu0
      %v1654 = vadd.f32 %v1485, %v1653
      %v1655 = vpop.f32.mrf.mxu0
      %v1656 = vadd.f32 %v1487, %v1655
      %1657 = vdwg.mxu0
      %v1658 = vmax.f32 %v1499, 0.0
      %v1659 = vmax.f32 %v1501, 0.0
      %v1660 = vmax.f32 %v1504, 0.0
      %v1661 = vmax.f32 %v1506, 0.0
      %v1662 = vmax.f32 %v1509, 0.0
      %v1663 = vmax.f32 %v1511, 0.0
      %v1664 = vmax.f32 %v1514, 0.0
      %v1665 = vmax.f32 %v1516, 0.0
      %v1666 = vmax.f32 %v1519, 0.0
      %v1667 = vmax.f32 %v1521, 0.0
      %v1668 = vmax.f32 %v1524, 0.0
      %v1669 = vmax.f32 %v1526, 0.0
      %v1670 = vmax.f32 %v1529, 0.0
      %v1671 = vmax.f32 %v1531, 0.0
      %v1672 = vmax.f32 %v1534, 0.0
      %v1673 = vmax.f32 %v1536, 0.0
      %v1674 = vmax.f32 %v1539, 0.0
      %v1675 = vmax.f32 %v1541, 0.0
      %v1676 = vmax.f32 %v1544, 0.0
      %v1677 = vmax.f32 %v1546, 0.0
      %v1678 = vmax.f32 %v1549, 0.0
      %v1679 = vmax.f32 %v1551, 0.0
      %v1680 = vmax.f32 %v1554, 0.0
      %v1681 = vmax.f32 %v1556, 0.0
      %v1682 = vmax.f32 %v1559, 0.0
      %v1683 = vmax.f32 %v1561, 0.0
      %v1684 = vmax.f32 %v1564, 0.0
      %v1685 = vmax.f32 %v1566, 0.0
      %v1686 = vmax.f32 %v1569, 0.0
      %v1687 = vmax.f32 %v1571, 0.0
      %v1688 = vmax.f32 %v1574, 0.0
      %v1689 = vmax.f32 %v1576, 0.0
      %v1690 = vmax.f32 %v1579, 0.0
      %v1691 = vmax.f32 %v1581, 0.0
      %v1692 = vmax.f32 %v1584, 0.0
      %v1693 = vmax.f32 %v1586, 0.0
      %v1694 = vmax.f32 %v1589, 0.0
      %v1695 = vmax.f32 %v1591, 0.0
      %v1696 = vmax.f32 %v1594, 0.0
      %v1697 = vmax.f32 %v1596, 0.0
      %v1698 = vmax.f32 %v1599, 0.0
      %v1699 = vmax.f32 %v1601, 0.0
      %v1700 = vmax.f32 %v1604, 0.0
      %v1701 = vmax.f32 %v1606, 0.0
      %v1702 = vmax.f32 %v1609, 0.0
      %v1703 = vmax.f32 %v1611, 0.0
      %v1704 = vmax.f32 %v1614, 0.0
      %v1705 = vmax.f32 %v1616, 0.0
      %v1706 = vmax.f32 %v1619, 0.0
      %v1707 = vmax.f32 %v1621, 0.0
      %v1708 = vmax.f32 %v1624, 0.0
      %v1709 = vmax.f32 %v1626, 0.0
      %v1710 = vmax.f32 %v1629, 0.0
      %v1711 = vmax.f32 %v1631, 0.0
      %v1712 = vmax.f32 %v1634, 0.0
      %v1713 = vmax.f32 %v1636, 0.0
      %v1714 = vmax.f32 %v1639, 0.0
      %v1715 = vmax.f32 %v1641, 0.0
      %v1716 = vmax.f32 %v1644, 0.0
      %v1717 = vmax.f32 %v1646, 0.0
      %v1718 = vmax.f32 %v1649, 0.0
      %v1719 = vmax.f32 %v1651, 0.0
      %v1720 = vmax.f32 %v1654, 0.0
      %v1721 = vmax.f32 %v1656, 0.0
      %v1722 = vpack.c.bf16 %v1659, %v1658
      %v1723 = vpack.c.bf16 %v1661, %v1660
      %v1724 = vpack.c.bf16 %v1663, %v1662
      %v1725 = vpack.c.bf16 %v1665, %v1664
      %v1726 = vpack.c.bf16 %v1667, %v1666
      %v1727 = vpack.c.bf16 %v1669, %v1668
      %v1728 = vpack.c.bf16 %v1671, %v1670
      %v1729 = vpack.c.bf16 %v1673, %v1672
      %v1730 = vpack.c.bf16 %v1675, %v1674
      %v1731 = vpack.c.bf16 %v1677, %v1676
      %v1732 = vpack.c.bf16 %v1679, %v1678
      %v1733 = vpack.c.bf16 %v1681, %v1680
      %v1734 = vpack.c.bf16 %v1683, %v1682
      %v1735 = vpack.c.bf16 %v1685, %v1684
      %v1736 = vpack.c.bf16 %v1687, %v1686
      %v1737 = vpack.c.bf16 %v1689, %v1688
      %v1738 = vpack.c.bf16 %v1691, %v1690
      %v1739 = vpack.c.bf16 %v1693, %v1692
      %v1740 = vpack.c.bf16 %v1695, %v1694
      %v1741 = vpack.c.bf16 %v1697, %v1696
      %v1742 = vpack.c.bf16 %v1699, %v1698
      %v1743 = vpack.c.bf16 %v1701, %v1700
      %v1744 = vpack.c.bf16 %v1703, %v1702
      %v1745 = vpack.c.bf16 %v1705, %v1704
      %v1746 = vpack.c.bf16 %v1707, %v1706
      %v1747 = vpack.c.bf16 %v1709, %v1708
      %v1748 = vpack.c.bf16 %v1711, %v1710
      %v1749 = vpack.c.bf16 %v1713, %v1712
      %v1750 = vpack.c.bf16 %v1715, %v1714
      %v1751 = vpack.c.bf16 %v1717, %v1716
      %v1752 = vpack.c.bf16 %v1719, %v1718
      %v1753 = vpack.c.bf16 %v1721, %v1720
      %v1754 = vld [vmem:[%s5] sm:$0xf]
      %v1755 = vld [vmem:[%s5 + $0x4] sm:$0xf]
      %v1756 = vld [vmem:[%s5 + $0x8] sm:$0xf]
      %v1757 = vld [vmem:[%s5 + $0xc] sm:$0xf]
      %v1758 = vld [vmem:[%s5 + $0x10] sm:$0xf]
      %v1759 = vld [vmem:[%s5 + $0x14] sm:$0xf]
      %v1760 = vld [vmem:[%s5 + $0x18] sm:$0xf]
      %v1761 = vld [vmem:[%s5 + $0x1c] sm:$0xf]
      %v1762 = vld [vmem:[%s5 + $0x20] sm:$0xf]
      %v1763 = vld [vmem:[%s5 + $0x24] sm:$0xf]
      %v1764 = vld [vmem:[%s5 + $0x28] sm:$0xf]
      %v1765 = vld [vmem:[%s5 + $0x2c] sm:$0xf]
      %v1766 = vld [vmem:[%s5 + $0x30] sm:$0xf]
      %v1767 = vld [vmem:[%s5 + $0x34] sm:$0xf]
      %v1768 = vld [vmem:[%s5 + $0x38] sm:$0xf]
      %v1769 = vld [vmem:[%s5 + $0x3c] sm:$0xf]
      %v1770 = vld [vmem:[%s6] sm:$0x1]
      %v1772 = vperm.slane %v1770, 0
      %v1790 = vunpack.c.l.b16 %v1754
      %v1791 = vunpack.c.l.b16 %v1755
      %v1792 = vunpack.c.l.b16 %v1756
      %v1793 = vunpack.c.l.b16 %v1757
      %v1794 = vunpack.c.l.b16 %v1758
      %v1795 = vunpack.c.l.b16 %v1759
      %v1796 = vunpack.c.l.b16 %v1760
      %v1797 = vunpack.c.l.b16 %v1761
      %v1798 = vunpack.c.l.b16 %v1762
      %v1799 = vunpack.c.l.b16 %v1763
      %v1800 = vunpack.c.l.b16 %v1764
      %v1801 = vunpack.c.l.b16 %v1765
      %v1802 = vunpack.c.l.b16 %v1766
      %v1803 = vunpack.c.l.b16 %v1767
      %v1804 = vunpack.c.l.b16 %v1768
      %v1805 = vunpack.c.l.b16 %v1769
      %v1806 = vpack.c.b16 %v1791, %v1790
      %v1807 = vpack.c.b16 %v1793, %v1792
      %v1808 = vpack.c.b16 %v1795, %v1794
      %v1809 = vpack.c.b16 %v1797, %v1796
      %v1810 = vpack.c.b16 %v1799, %v1798
      %v1811 = vpack.c.b16 %v1801, %v1800
      %v1812 = vpack.c.b16 %v1803, %v1802
      %v1813 = vpack.c.b16 %v1805, %v1804
      %1822 = vmatpush.bf16.msra.mxu0 %v1813
      %1823 = vmatpush.bf16.msra.mxu0 %v1812
      %1824 = vmatpush.bf16.msra.mxu0 %v1811
      %1825 = vmatpush.bf16.msra.mxu0 %v1810
      %1826 = vmatpush.bf16.msra.mxu0 %v1809
      %1827 = vmatpush.bf16.msra.mxu0 %v1808
      %1828 = vmatpush.bf16.msra.mxu0 %v1807
      %1829 = vmatpush.bf16.msra.mxu0 %v1806
      %1830 = vmatmul.bf16.gmra.mxu0 %v1722
      %v1831 = vpop.f32.mrf.mxu0
      %v1832 = vadd.f32 %v1772, %v1831
      %v1833 = vpop.f32.mrf.mxu0
      %v1834 = vadd.f32 %v1772, %v1833
      %1835 = vmatmul.bf16.gmra.mxu0 %v1723
      %v1836 = vpop.f32.mrf.mxu0
      %v1837 = vadd.f32 %v1772, %v1836
      %v1838 = vpop.f32.mrf.mxu0
      %v1839 = vadd.f32 %v1772, %v1838
      %1840 = vmatmul.bf16.gmra.mxu0 %v1724
      %v1841 = vpop.f32.mrf.mxu0
      %v1842 = vadd.f32 %v1772, %v1841
      %v1843 = vpop.f32.mrf.mxu0
      %v1844 = vadd.f32 %v1772, %v1843
      %1845 = vmatmul.bf16.gmra.mxu0 %v1725
      %v1846 = vpop.f32.mrf.mxu0
      %v1847 = vadd.f32 %v1772, %v1846
      %v1848 = vpop.f32.mrf.mxu0
      %v1849 = vadd.f32 %v1772, %v1848
      %1850 = vmatmul.bf16.gmra.mxu0 %v1726
      %v1851 = vpop.f32.mrf.mxu0
      %v1852 = vadd.f32 %v1772, %v1851
      %v1853 = vpop.f32.mrf.mxu0
      %v1854 = vadd.f32 %v1772, %v1853
      %1855 = vmatmul.bf16.gmra.mxu0 %v1727
      %v1856 = vpop.f32.mrf.mxu0
      %v1857 = vadd.f32 %v1772, %v1856
      %v1858 = vpop.f32.mrf.mxu0
      %v1859 = vadd.f32 %v1772, %v1858
      %1860 = vmatmul.bf16.gmra.mxu0 %v1728
      %v1861 = vpop.f32.mrf.mxu0
      %v1862 = vadd.f32 %v1772, %v1861
      %v1863 = vpop.f32.mrf.mxu0
      %v1864 = vadd.f32 %v1772, %v1863
      %1865 = vmatmul.bf16.gmra.mxu0 %v1729
      %v1866 = vpop.f32.mrf.mxu0
      %v1867 = vadd.f32 %v1772, %v1866
      %v1868 = vpop.f32.mrf.mxu0
      %v1869 = vadd.f32 %v1772, %v1868
      %1870 = vmatmul.bf16.gmra.mxu0 %v1730
      %v1871 = vpop.f32.mrf.mxu0
      %v1872 = vadd.f32 %v1772, %v1871
      %v1873 = vpop.f32.mrf.mxu0
      %v1874 = vadd.f32 %v1772, %v1873
      %1875 = vmatmul.bf16.gmra.mxu0 %v1731
      %v1876 = vpop.f32.mrf.mxu0
      %v1877 = vadd.f32 %v1772, %v1876
      %v1878 = vpop.f32.mrf.mxu0
      %v1879 = vadd.f32 %v1772, %v1878
      %1880 = vmatmul.bf16.gmra.mxu0 %v1732
      %v1881 = vpop.f32.mrf.mxu0
      %v1882 = vadd.f32 %v1772, %v1881
      %v1883 = vpop.f32.mrf.mxu0
      %v1884 = vadd.f32 %v1772, %v1883
      %1885 = vmatmul.bf16.gmra.mxu0 %v1733
      %v1886 = vpop.f32.mrf.mxu0
      %v1887 = vadd.f32 %v1772, %v1886
      %v1888 = vpop.f32.mrf.mxu0
      %v1889 = vadd.f32 %v1772, %v1888
      %1890 = vmatmul.bf16.gmra.mxu0 %v1734
      %v1891 = vpop.f32.mrf.mxu0
      %v1892 = vadd.f32 %v1772, %v1891
      %v1893 = vpop.f32.mrf.mxu0
      %v1894 = vadd.f32 %v1772, %v1893
      %1895 = vmatmul.bf16.gmra.mxu0 %v1735
      %v1896 = vpop.f32.mrf.mxu0
      %v1897 = vadd.f32 %v1772, %v1896
      %v1898 = vpop.f32.mrf.mxu0
      %v1899 = vadd.f32 %v1772, %v1898
      %1900 = vmatmul.bf16.gmra.mxu0 %v1736
      %v1901 = vpop.f32.mrf.mxu0
      %v1902 = vadd.f32 %v1772, %v1901
      %v1903 = vpop.f32.mrf.mxu0
      %v1904 = vadd.f32 %v1772, %v1903
      %1905 = vmatmul.bf16.gmra.mxu0 %v1737
      %v1906 = vpop.f32.mrf.mxu0
      %v1907 = vadd.f32 %v1772, %v1906
      %v1908 = vpop.f32.mrf.mxu0
      %v1909 = vadd.f32 %v1772, %v1908
      %1910 = vmatmul.bf16.gmra.mxu0 %v1738
      %v1911 = vpop.f32.mrf.mxu0
      %v1912 = vadd.f32 %v1772, %v1911
      %v1913 = vpop.f32.mrf.mxu0
      %v1914 = vadd.f32 %v1772, %v1913
      %1915 = vmatmul.bf16.gmra.mxu0 %v1739
      %v1916 = vpop.f32.mrf.mxu0
      %v1917 = vadd.f32 %v1772, %v1916
      %v1918 = vpop.f32.mrf.mxu0
      %v1919 = vadd.f32 %v1772, %v1918
      %1920 = vmatmul.bf16.gmra.mxu0 %v1740
      %v1921 = vpop.f32.mrf.mxu0
      %v1922 = vadd.f32 %v1772, %v1921
      %v1923 = vpop.f32.mrf.mxu0
      %v1924 = vadd.f32 %v1772, %v1923
      %1925 = vmatmul.bf16.gmra.mxu0 %v1741
      %v1926 = vpop.f32.mrf.mxu0
      %v1927 = vadd.f32 %v1772, %v1926
      %v1928 = vpop.f32.mrf.mxu0
      %v1929 = vadd.f32 %v1772, %v1928
      %1930 = vmatmul.bf16.gmra.mxu0 %v1742
      %v1931 = vpop.f32.mrf.mxu0
      %v1932 = vadd.f32 %v1772, %v1931
      %v1933 = vpop.f32.mrf.mxu0
      %v1934 = vadd.f32 %v1772, %v1933
      %1935 = vmatmul.bf16.gmra.mxu0 %v1743
      %v1936 = vpop.f32.mrf.mxu0
      %v1937 = vadd.f32 %v1772, %v1936
      %v1938 = vpop.f32.mrf.mxu0
      %v1939 = vadd.f32 %v1772, %v1938
      %1940 = vmatmul.bf16.gmra.mxu0 %v1744
      %v1941 = vpop.f32.mrf.mxu0
      %v1942 = vadd.f32 %v1772, %v1941
      %v1943 = vpop.f32.mrf.mxu0
      %v1944 = vadd.f32 %v1772, %v1943
      %1945 = vmatmul.bf16.gmra.mxu0 %v1745
      %v1946 = vpop.f32.mrf.mxu0
      %v1947 = vadd.f32 %v1772, %v1946
      %v1948 = vpop.f32.mrf.mxu0
      %v1949 = vadd.f32 %v1772, %v1948
      %1950 = vmatmul.bf16.gmra.mxu0 %v1746
      %v1951 = vpop.f32.mrf.mxu0
      %v1952 = vadd.f32 %v1772, %v1951
      %v1953 = vpop.f32.mrf.mxu0
      %v1954 = vadd.f32 %v1772, %v1953
      %1955 = vmatmul.bf16.gmra.mxu0 %v1747
      %v1956 = vpop.f32.mrf.mxu0
      %v1957 = vadd.f32 %v1772, %v1956
      %v1958 = vpop.f32.mrf.mxu0
      %v1959 = vadd.f32 %v1772, %v1958
      %1960 = vmatmul.bf16.gmra.mxu0 %v1748
      %v1961 = vpop.f32.mrf.mxu0
      %v1962 = vadd.f32 %v1772, %v1961
      %v1963 = vpop.f32.mrf.mxu0
      %v1964 = vadd.f32 %v1772, %v1963
      %1965 = vmatmul.bf16.gmra.mxu0 %v1749
      %v1966 = vpop.f32.mrf.mxu0
      %v1967 = vadd.f32 %v1772, %v1966
      %v1968 = vpop.f32.mrf.mxu0
      %v1969 = vadd.f32 %v1772, %v1968
      %1970 = vmatmul.bf16.gmra.mxu0 %v1750
      %v1971 = vpop.f32.mrf.mxu0
      %v1972 = vadd.f32 %v1772, %v1971
      %v1973 = vpop.f32.mrf.mxu0
      %v1974 = vadd.f32 %v1772, %v1973
      %1975 = vmatmul.bf16.gmra.mxu0 %v1751
      %v1976 = vpop.f32.mrf.mxu0
      %v1977 = vadd.f32 %v1772, %v1976
      %v1978 = vpop.f32.mrf.mxu0
      %v1979 = vadd.f32 %v1772, %v1978
      %1980 = vmatmul.bf16.gmra.mxu0 %v1752
      %v1981 = vpop.f32.mrf.mxu0
      %v1982 = vadd.f32 %v1772, %v1981
      %v1983 = vpop.f32.mrf.mxu0
      %v1984 = vadd.f32 %v1772, %v1983
      %1985 = vmatmul.bf16.gmra.mxu0 %v1753
      %v1986 = vpop.f32.mrf.mxu0
      %v1987 = vadd.f32 %v1772, %v1986
      %v1988 = vpop.f32.mrf.mxu0
      %v1989 = vadd.f32 %v1772, %v1988
      %1990 = vdwg.mxu0
      %1991 = vst [vmem:[%s280] sm:$0xff] %v1832
      %1992 = vst [vmem:[%s280 + $0x8] sm:$0xff] %v1834
      %1993 = vst [vmem:[%s280 + $0x10] sm:$0xff] %v1837
      %1994 = vst [vmem:[%s280 + $0x18] sm:$0xff] %v1839
      %1995 = vst [vmem:[%s280 + $0x20] sm:$0xff] %v1842
      %1996 = vst [vmem:[%s280 + $0x28] sm:$0xff] %v1844
      %1997 = vst [vmem:[%s280 + $0x30] sm:$0xff] %v1847
      %1998 = vst [vmem:[%s280 + $0x38] sm:$0xff] %v1849
      %1999 = vst [vmem:[%s280 + $0x40] sm:$0xff] %v1852
      %2000 = vst [vmem:[%s280 + $0x48] sm:$0xff] %v1854
      %2001 = vst [vmem:[%s280 + $0x50] sm:$0xff] %v1857
      %2002 = vst [vmem:[%s280 + $0x58] sm:$0xff] %v1859
      %2003 = vst [vmem:[%s280 + $0x60] sm:$0xff] %v1862
      %2004 = vst [vmem:[%s280 + $0x68] sm:$0xff] %v1864
      %2005 = vst [vmem:[%s280 + $0x70] sm:$0xff] %v1867
      %2006 = vst [vmem:[%s280 + $0x78] sm:$0xff] %v1869
      %2007 = vst [vmem:[%s280 + $0x80] sm:$0xff] %v1872
      %2008 = vst [vmem:[%s280 + $0x88] sm:$0xff] %v1874
      %2009 = vst [vmem:[%s280 + $0x90] sm:$0xff] %v1877
      %2010 = vst [vmem:[%s280 + $0x98] sm:$0xff] %v1879
      %2011 = vst [vmem:[%s280 + $0xa0] sm:$0xff] %v1882
      %2012 = vst [vmem:[%s280 + $0xa8] sm:$0xff] %v1884
      %2013 = vst [vmem:[%s280 + $0xb0] sm:$0xff] %v1887
      %2014 = vst [vmem:[%s280 + $0xb8] sm:$0xff] %v1889
      %2015 = vst [vmem:[%s280 + $0xc0] sm:$0xff] %v1892
      %2016 = vst [vmem:[%s280 + $0xc8] sm:$0xff] %v1894
      %2017 = vst [vmem:[%s280 + $0xd0] sm:$0xff] %v1897
      %2018 = vst [vmem:[%s280 + $0xd8] sm:$0xff] %v1899
      %2019 = vst [vmem:[%s280 + $0xe0] sm:$0xff] %v1902
      %2020 = vst [vmem:[%s280 + $0xe8] sm:$0xff] %v1904
      %2021 = vst [vmem:[%s280 + $0xf0] sm:$0xff] %v1907
      %2022 = vst [vmem:[%s280 + $0xf8] sm:$0xff] %v1909
      %2023 = vst [vmem:[%s280 + $0x100] sm:$0xff] %v1912
      %2024 = vst [vmem:[%s280 + $0x108] sm:$0xff] %v1914
      %2025 = vst [vmem:[%s280 + $0x110] sm:$0xff] %v1917
      %2026 = vst [vmem:[%s280 + $0x118] sm:$0xff] %v1919
      %2027 = vst [vmem:[%s280 + $0x120] sm:$0xff] %v1922
      %2028 = vst [vmem:[%s280 + $0x128] sm:$0xff] %v1924
      %2029 = vst [vmem:[%s280 + $0x130] sm:$0xff] %v1927
      %2030 = vst [vmem:[%s280 + $0x138] sm:$0xff] %v1929
      %2031 = vst [vmem:[%s280 + $0x140] sm:$0xff] %v1932
      %2032 = vst [vmem:[%s280 + $0x148] sm:$0xff] %v1934
      %2033 = vst [vmem:[%s280 + $0x150] sm:$0xff] %v1937
      %2034 = vst [vmem:[%s280 + $0x158] sm:$0xff] %v1939
      %2035 = vst [vmem:[%s280 + $0x160] sm:$0xff] %v1942
      %2036 = vst [vmem:[%s280 + $0x168] sm:$0xff] %v1944
      %2037 = vst [vmem:[%s280 + $0x170] sm:$0xff] %v1947
      %2038 = vst [vmem:[%s280 + $0x178] sm:$0xff] %v1949
      %2039 = vst [vmem:[%s280 + $0x180] sm:$0xff] %v1952
      %2040 = vst [vmem:[%s280 + $0x188] sm:$0xff] %v1954
      %2041 = vst [vmem:[%s280 + $0x190] sm:$0xff] %v1957
      %2042 = vst [vmem:[%s280 + $0x198] sm:$0xff] %v1959
      %2043 = vst [vmem:[%s280 + $0x1a0] sm:$0xff] %v1962
      %2044 = vst [vmem:[%s280 + $0x1a8] sm:$0xff] %v1964
      %2045 = vst [vmem:[%s280 + $0x1b0] sm:$0xff] %v1967
      %2046 = vst [vmem:[%s280 + $0x1b8] sm:$0xff] %v1969
      %2047 = vst [vmem:[%s280 + $0x1c0] sm:$0xff] %v1972
      %2048 = vst [vmem:[%s280 + $0x1c8] sm:$0xff] %v1974
      %2049 = vst [vmem:[%s280 + $0x1d0] sm:$0xff] %v1977
      %2050 = vst [vmem:[%s280 + $0x1d8] sm:$0xff] %v1979
      %2051 = vst [vmem:[%s280 + $0x1e0] sm:$0xff] %v1982
      %2052 = vst [vmem:[%s280 + $0x1e8] sm:$0xff] %v1984
      %2053 = vst [vmem:[%s280 + $0x1f0] sm:$0xff] %v1987
      %2054 = vst [vmem:[%s280 + $0x1f8] sm:$0xff] %v1989
      %s2055 = smul.u32 64, %s18
      %p2056 = scmp.lt.s32.totalorder %s2055, 127
      %s2057 = scalar_select %p2056, %s2055, 127
      %s2058 = smul.addr %s2057, 8
      %s2059 = scalar_lea.vmem %s7, %s2058
      // Predicated region
      $region49: #{mlp_forward.1} parent=47 // pred_check
        %p2060 = pneg %p188
      $region50: #{mlp_forward.1} parent=47 // pred_check_branch
        %2062 = sbr.rel (%p2060) target = $region52
      $region51: #{mlp_forward.1} parent=47 // pred_region
        %s2063 = smul.u32 64, %s18
      $region52: #{mlp_forward.1} parent=47 // pred_fallthru
        _
    $region48: #{mlp_forward.1} parent=5 // pred_fallthru
      _
    %p2064 = scmp.le.s32.totalorder 2, %s13
    // Predicated region
    $region53: #{mlp_forward.1} parent=5 // pred_check
      %p2065 = pneg %p2064
    $region54: #{mlp_forward.1} parent=5 // pred_check_branch
      %2067 = sbr.rel (%p2065) target = $region56
    $region55: #{mlp_forward.1} parent=5 // pred_region
      %s2068 = ssub.s32 %s13, 2
      // Predicated region
      $region57: #{mlp_forward.1} parent=55 // pred_check
        %p2069 = pneg %p194
      $region58: #{mlp_forward.1} parent=55 // pred_check_branch
        %2071 = sbr.rel (%p2069) target = $region60
      $region59: #{mlp_forward.1} parent=55 // pred_region
        %s2072 = smul.u32 64, %s19
        %p2073 = scmp.lt.s32.totalorder %s2072, 127
        %s2074 = scalar_select %p2073, %s2072, 127
        %s2075 = smul.addr %s2074, 8
        %s2076 = scalar_lea.vmem %s7, %s2075
      $region60: #{mlp_forward.1} parent=55 // pred_fallthru
        _
    $region56: #{mlp_forward.1} parent=5 // pred_fallthru
      _
  $region6: #{mlp_forward.1} parent=0 // loop_footer
    %s17 = sadd.s32 1, %s13
  $region7: #{mlp_forward.1} parent=0 // loop_footer_branch
    %12 = sbr.rel target = $region3
  $region8: #{mlp_forward.1} parent=0 // loop_exit
    _

</llo_original>
